<compile_context>
chip_gen: v7x
topology: tpu7x:2x2x1
jax: 0.10.0
libtpu: 0.0.40
codegen_flags: <defaults>
</compile_context>

<pallas_src>
import functools

import jax
import jax.numpy as jnp
from jax.experimental import pallas as pl
from jax.experimental.pallas import tpu as pltpu

NUMERIC_FEATURES = ["log_calibration_value"]          # single numeric column
CATEGORICAL_FEATURES = ["chain", "dept", "brand"]
VOCAB_SIZES = {"chain": 100, "dept": 50, "brand": 16}
OUTPUT_UNITS = 3


def embedding_dim(vocab_size: int) -> int:
    return int(vocab_size ** 0.25) + 1


def _dnn_kernel(offsets, *refs):
    """offsets: static per-feature row offsets into the block-diagonal table."""
    f = len(offsets)
    idx_refs = refs[:f]                               # F x (B, 1) int32
    (num_ref,                                         # (B, 1)       f32
     tbl_ref,                                         # (V_pad, E_t) f32 block-diag
     w1n_ref,                                         # (1, H1)      numeric row of W1
     w1e_ref,                                         # (E_t, H1)    embedding rows of W1
     b1_ref,                                          # (1, H1)
     w2_ref, b2_ref,                                  # (H1, H2), (1, H2)
     w3_ref, b3_ref,                                  # (H2, O),  (1, O)
     out_ref) = refs[f:]                              # (B, O)

    b = num_ref.shape[0]
    v_pad = tbl_ref.shape[0]
    hi = jax.lax.Precision.HIGHEST

    # Multi-hot over the concatenated (offset) vocab: one 1 per feature block.
    # Out-of-range / negative ids silently yield a zero embedding row (unlike
    # nn.Embedding, which would raise); ids are assumed in [0, V_f).
    lane = jax.lax.broadcasted_iota(jnp.int32, (b, v_pad), 1)
    hot = lane == (idx_refs[0][...] + offsets[0])
    for fi in range(1, f):
        hot = jnp.logical_or(hot, lane == (idx_refs[fi][...] + offsets[fi]))
    multihot = hot.astype(jnp.float32)                # (B, V_pad)

    # All feature embeddings in ONE MXU matmul against the block-diagonal
    # table -> already-concatenated (B, sum_E).  Exact f32 gather at HIGHEST.
    emb = jnp.dot(multihot, tbl_ref[...],
                  preferred_element_type=jnp.float32, precision=hi)

    # Linear(total_input, H1): the single numeric column contributes via a
    # VPU broadcast outer product (K=1), the embeddings via the MXU.
    h1 = num_ref[...] * w1n_ref[...]
    h1 = h1 + jnp.dot(emb, w1e_ref[...],
                      preferred_element_type=jnp.float32, precision=hi)
    h1 = jnp.maximum(h1 + b1_ref[...], 0.0)

    h2 = jnp.dot(h1, w2_ref[...],
                 preferred_element_type=jnp.float32, precision=hi)
    h2 = jnp.maximum(h2 + b2_ref[...], 0.0)

    logits = jnp.dot(h2, w3_ref[...],
                     preferred_element_type=jnp.float32, precision=hi)
    out_ref[...] = (logits + b3_ref[...]).astype(out_ref.dtype)


def dnn_model_forward(numeric, cat_indices, tables, w1, b1, w2, b2, w3, b3):
    """Fused DNNModel forward.

    numeric:     (B, 1) f32 column (the single NUMERIC_FEATURE)
    cat_indices: list of (B,) integer arrays, one per categorical feature
    tables:      list of (V_i, E_i) f32 embedding tables
    w1/b1/w2/b2/w3/b3: Linear weights, w1 rows ordered [numeric | embeddings].
    Returns (B, output_units) f32.
    """
    B = numeric.shape[0]
    v_dims = [int(t.shape[0]) for t in tables]
    e_dims = [int(t.shape[1]) for t in tables]
    e_tot = sum(e_dims)
    v_tot = sum(v_dims)
    v_pad = ((v_tot + 127) // 128) * 128              # lane-aligned contraction dim

    # Block-diagonal combined table (done once per trace; in a real model,
    # hoist this out of the per-step jit).  Padded rows are zero -> safe.
    blocks, col = [], 0
    for t in tables:
        _, e = t.shape
        blocks.append(jnp.pad(t.astype(jnp.float32),
                              ((0, 0), (col, e_tot - col - e))))
        col += e
    tbl_bd = jnp.concatenate(blocks, axis=0)
    if v_pad != v_tot:
        tbl_bd = jnp.pad(tbl_bd, ((0, v_pad - v_tot), (0, 0)))

    offsets, acc = [], 0
    for v in v_dims:
        offsets.append(acc)
        acc += v
    offsets = tuple(offsets)

    # b-major index columns: plain zero-copy reshape, no transpose HLO.
    # (Real pandas-derived int64 ids are truncated to int32 here.)
    idx_cols = [idx.astype(jnp.int32).reshape(B, 1) for idx in cat_indices]

    n_num = numeric.shape[1]                          # == 1 for this model
    w1n = w1[:n_num, :]
    w1e = w1[n_num:, :]
    b1r = b1.reshape(1, -1)
    b2r = b2.reshape(1, -1)
    b3r = b3.reshape(1, -1)

    vm = pl.BlockSpec(memory_space=pltpu.MemorySpace.VMEM)
    kernel = functools.partial(_dnn_kernel, offsets)

    return pl.pallas_call(
        kernel,
        out_shape=jax.ShapeDtypeStruct((B, w3.shape[1]), jnp.float32),
        in_specs=[vm] * (len(idx_cols) + 9),
        out_specs=vm,
    )(*idx_cols, numeric.astype(jnp.float32), tbl_bd,
      w1n, w1e, b1r, w2, b2r, w3, b3r)


if __name__ == "__main__":
    key = jax.random.PRNGKey(0)
    B = 8

    vocabs = [VOCAB_SIZES[k] for k in CATEGORICAL_FEATURES]
    e_dims = [embedding_dim(v) for v in vocabs]       # [4, 3, 3]
    total_input = len(NUMERIC_FEATURES) + sum(e_dims)  # 1 + 10 = 11

    keys = jax.random.split(key, 16)
    tables = [jax.random.normal(keys[i], (v, e), dtype=jnp.float32)
              for i, (v, e) in enumerate(zip(vocabs, e_dims))]
    cat_indices = [jax.random.randint(keys[4 + i], (B,), 0, v, dtype=jnp.int32)
                   for i, v in enumerate(vocabs)]
    numeric = jax.random.normal(keys[8], (B, 1), dtype=jnp.float32)

    w1 = jax.random.normal(keys[9], (total_input, 64), dtype=jnp.float32) * 0.1
    b1 = jax.random.normal(keys[10], (64,), dtype=jnp.float32) * 0.1
    w2 = jax.random.normal(keys[11], (64, 32), dtype=jnp.float32) * 0.1
    b2 = jax.random.normal(keys[12], (32,), dtype=jnp.float32) * 0.1
    w3 = jax.random.normal(keys[13], (32, OUTPUT_UNITS), dtype=jnp.float32) * 0.1
    b3 = jax.random.normal(keys[14], (OUTPUT_UNITS,), dtype=jnp.float32) * 0.1

    fwd = jax.jit(dnn_model_forward)
    out = jax.block_until_ready(
        fwd(numeric, cat_indices, tables, w1, b1, w2, b2, w3, b3))

    # Reference: gather embeddings, flatten (identity for (B,) ids), concat,
    # then the MLP head — computed with the same HIGHEST-precision matmuls.
    hi = jax.lax.Precision.HIGHEST
    embs = [jnp.take(t, idx, axis=0) for t, idx in zip(tables, cat_indices)]
    x = jnp.concatenate([numeric] + embs, axis=1)
    h1 = jnp.maximum(jnp.dot(x, w1, precision=hi) + b1, 0.0)
    h2 = jnp.maximum(jnp.dot(h1, w2, precision=hi) + b2, 0.0)
    ref = jnp.dot(h2, w3, precision=hi) + b3

    assert out.shape == (B, OUTPUT_UNITS)
    assert jnp.allclose(out, ref, atol=1e-4, rtol=1e-4), "mismatch vs reference"

    print("KERNEL_OK")
</pallas_src>

<mosaic_0001>
module attributes {stable_mosaic.version = 11 : i64} {
  func.func @_dnn_kernel(%arg0: memref<8x1xi32, #tpu.memory_space<vmem>>, %arg1: memref<8x1xi32, #tpu.memory_space<vmem>>, %arg2: memref<8x1xi32, #tpu.memory_space<vmem>>, %arg3: memref<8x1xf32, #tpu.memory_space<vmem>>, %arg4: memref<256x10xf32, #tpu.memory_space<vmem>>, %arg5: memref<1x64xf32, #tpu.memory_space<vmem>>, %arg6: memref<10x64xf32, #tpu.memory_space<vmem>>, %arg7: memref<1x64xf32, #tpu.memory_space<vmem>>, %arg8: memref<64x32xf32, #tpu.memory_space<vmem>>, %arg9: memref<1x32xf32, #tpu.memory_space<vmem>>, %arg10: memref<32x3xf32, #tpu.memory_space<vmem>>, %arg11: memref<1x3xf32, #tpu.memory_space<vmem>>, %arg12: memref<8x3xf32, #tpu.memory_space<vmem>>) attributes {dimension_semantics = [], scalar_prefetch = 0 : i64, scratch_operands = 0 : i64, tpu.core_type = #tpu.core_type<tc>} {
    %0 = tpu.iota {dimensions = array<i32: 1>} : vector<8x256xi32>
    %c0 = arith.constant 0 : index
    %c0_0 = arith.constant 0 : index
    %1 = vector.load %arg0[%c0, %c0_0] : memref<8x1xi32, #tpu.memory_space<vmem>>, vector<8x1xi32>
    %c0_i32 = arith.constant 0 : i32
    %2 = vector.broadcast %c0_i32 : i32 to vector<8x1xi32>
    %3 = arith.addi %1, %2 : vector<8x1xi32>
    %4 = vector.broadcast %3 : vector<8x1xi32> to vector<8x256xi32>
    %5 = arith.cmpi eq, %0, %4 : vector<8x256xi32>
    %c0_1 = arith.constant 0 : index
    %c0_2 = arith.constant 0 : index
    %6 = vector.load %arg1[%c0_1, %c0_2] : memref<8x1xi32, #tpu.memory_space<vmem>>, vector<8x1xi32>
    %c100_i32 = arith.constant 100 : i32
    %7 = vector.broadcast %c100_i32 : i32 to vector<8x1xi32>
    %8 = arith.addi %6, %7 : vector<8x1xi32>
    %9 = vector.broadcast %8 : vector<8x1xi32> to vector<8x256xi32>
    %10 = arith.cmpi eq, %0, %9 : vector<8x256xi32>
    %11 = arith.ori %5, %10 : vector<8x256xi1>
    %c0_3 = arith.constant 0 : index
    %c0_4 = arith.constant 0 : index
    %12 = vector.load %arg2[%c0_3, %c0_4] : memref<8x1xi32, #tpu.memory_space<vmem>>, vector<8x1xi32>
    %c150_i32 = arith.constant 150 : i32
    %13 = vector.broadcast %c150_i32 : i32 to vector<8x1xi32>
    %14 = arith.addi %12, %13 : vector<8x1xi32>
    %15 = vector.broadcast %14 : vector<8x1xi32> to vector<8x256xi32>
    %16 = arith.cmpi eq, %0, %15 : vector<8x256xi32>
    %17 = arith.ori %11, %16 : vector<8x256xi1>
    %18 = arith.extui %17 : vector<8x256xi1> to vector<8x256xi32>
    %19 = arith.sitofp %18 : vector<8x256xi32> to vector<8x256xf32>
    %c0_5 = arith.constant 0 : index
    %c0_6 = arith.constant 0 : index
    %20 = vector.load %arg4[%c0_5, %c0_6] : memref<256x10xf32, #tpu.memory_space<vmem>>, vector<256x10xf32>
    %cst = arith.constant dense<0.000000e+00> : vector<8x10xf32>
    %21 = tpu.matmul %19, %20, %cst {dimension_numbers = #tpu.dot_dimension_numbers<[1], [0], [0], [1], [0, 0, 1, 1], [], []>, precision = #tpu.contract_precision<fp32>} : vector<8x256xf32>, vector<256x10xf32>, vector<8x10xf32> -> vector<8x10xf32>
    %c0_7 = arith.constant 0 : index
    %c0_8 = arith.constant 0 : index
    %22 = vector.load %arg3[%c0_7, %c0_8] : memref<8x1xf32, #tpu.memory_space<vmem>>, vector<8x1xf32>
    %c0_9 = arith.constant 0 : index
    %c0_10 = arith.constant 0 : index
    %23 = vector.load %arg5[%c0_9, %c0_10] : memref<1x64xf32, #tpu.memory_space<vmem>>, vector<1x64xf32>
    %24 = vector.broadcast %22 : vector<8x1xf32> to vector<8x64xf32>
    %25 = vector.broadcast %23 : vector<1x64xf32> to vector<8x64xf32>
    %26 = arith.mulf %24, %25 : vector<8x64xf32>
    %c0_11 = arith.constant 0 : index
    %c0_12 = arith.constant 0 : index
    %27 = vector.load %arg6[%c0_11, %c0_12] : memref<10x64xf32, #tpu.memory_space<vmem>>, vector<10x64xf32>
    %cst_13 = arith.constant dense<0.000000e+00> : vector<8x64xf32>
    %28 = tpu.matmul %21, %27, %cst_13 {dimension_numbers = #tpu.dot_dimension_numbers<[1], [0], [0], [1], [0, 0, 1, 1], [], []>, precision = #tpu.contract_precision<fp32>} : vector<8x10xf32>, vector<10x64xf32>, vector<8x64xf32> -> vector<8x64xf32>
    %29 = arith.addf %26, %28 : vector<8x64xf32>
    %c0_14 = arith.constant 0 : index
    %c0_15 = arith.constant 0 : index
    %30 = vector.load %arg7[%c0_14, %c0_15] : memref<1x64xf32, #tpu.memory_space<vmem>>, vector<1x64xf32>
    %31 = vector.broadcast %30 : vector<1x64xf32> to vector<8x64xf32>
    %32 = arith.addf %29, %31 : vector<8x64xf32>
    %cst_16 = arith.constant 0.000000e+00 : f32
    %33 = vector.broadcast %cst_16 : f32 to vector<8x64xf32>
    %34 = arith.maximumf %32, %33 : vector<8x64xf32>
    %c0_17 = arith.constant 0 : index
    %c0_18 = arith.constant 0 : index
    %35 = vector.load %arg8[%c0_17, %c0_18] : memref<64x32xf32, #tpu.memory_space<vmem>>, vector<64x32xf32>
    %cst_19 = arith.constant dense<0.000000e+00> : vector<8x32xf32>
    %36 = tpu.matmul %34, %35, %cst_19 {dimension_numbers = #tpu.dot_dimension_numbers<[1], [0], [0], [1], [0, 0, 1, 1], [], []>, precision = #tpu.contract_precision<fp32>} : vector<8x64xf32>, vector<64x32xf32>, vector<8x32xf32> -> vector<8x32xf32>
    %c0_20 = arith.constant 0 : index
    %c0_21 = arith.constant 0 : index
    %37 = vector.load %arg9[%c0_20, %c0_21] : memref<1x32xf32, #tpu.memory_space<vmem>>, vector<1x32xf32>
    %38 = vector.broadcast %37 : vector<1x32xf32> to vector<8x32xf32>
    %39 = arith.addf %36, %38 : vector<8x32xf32>
    %cst_22 = arith.constant 0.000000e+00 : f32
    %40 = vector.broadcast %cst_22 : f32 to vector<8x32xf32>
    %41 = arith.maximumf %39, %40 : vector<8x32xf32>
    %c0_23 = arith.constant 0 : index
    %c0_24 = arith.constant 0 : index
    %42 = vector.load %arg10[%c0_23, %c0_24] : memref<32x3xf32, #tpu.memory_space<vmem>>, vector<32x3xf32>
    %cst_25 = arith.constant dense<0.000000e+00> : vector<8x3xf32>
    %43 = tpu.matmul %41, %42, %cst_25 {dimension_numbers = #tpu.dot_dimension_numbers<[1], [0], [0], [1], [0, 0, 1, 1], [], []>, precision = #tpu.contract_precision<fp32>} : vector<8x32xf32>, vector<32x3xf32>, vector<8x3xf32> -> vector<8x3xf32>
    %c0_26 = arith.constant 0 : index
    %c0_27 = arith.constant 0 : index
    %44 = vector.load %arg11[%c0_26, %c0_27] : memref<1x3xf32, #tpu.memory_space<vmem>>, vector<1x3xf32>
    %45 = vector.broadcast %44 : vector<1x3xf32> to vector<8x3xf32>
    %46 = arith.addf %43, %45 : vector<8x3xf32>
    %c0_28 = arith.constant 0 : index
    %c0_29 = arith.constant 0 : index
    %47 = vector.load %arg12[%c0_28, %c0_29] : memref<8x3xf32, #tpu.memory_space<vmem>>, vector<8x3xf32>
    tpu.vector_store %arg12[%c0_28, %c0_29], %46 {strides = array<i32>} : memref<8x3xf32, #tpu.memory_space<vmem>>, vector<8x3xf32>,
    return
  }
}

</mosaic_0001>

<llo_original>
// kernel: dnn_model_forward.1
$region0: #{dnn_model_forward.1}
  #allocation0 [shape = 'u32[]', space=smem, size = 0x4, offset = 0x4, fixed_abs, tag = 'smem constant byte address 0x4 - core index']
  #allocation1 [shape = 'u32[144,128]{1,0:T(1,128)}', space=vmem, size = 0x12000, scoped, tag = 'internal scratch']
  %s0 = inlined_call_operand.vmem [shape: s32[8,1], index: 0, kind: input, shape index: {}]
  %s1 = inlined_call_operand.vmem [shape: s32[8,1], index: 1, kind: input, shape index: {}]
  %s2 = inlined_call_operand.vmem [shape: s32[8,1], index: 2, kind: input, shape index: {}]
  %s3 = inlined_call_operand.vmem [shape: f32[8,1], index: 3, kind: input, shape index: {}]
  %s4 = inlined_call_operand.vmem [shape: f32[256,10], index: 4, kind: input, shape index: {}]
  %s5 = inlined_call_operand.vmem [shape: f32[1,64], index: 5, kind: input, shape index: {}]
  %s6 = inlined_call_operand.vmem [shape: f32[10,64], index: 6, kind: input, shape index: {}]
  %s7 = inlined_call_operand.vmem [shape: f32[1,64], index: 7, kind: input, shape index: {}]
  %s8 = inlined_call_operand.vmem [shape: f32[64,32], index: 8, kind: input, shape index: {}]
  %s9 = inlined_call_operand.vmem [shape: f32[1,32], index: 9, kind: input, shape index: {}]
  %s10 = inlined_call_operand.vmem [shape: f32[32,3], index: 10, kind: input, shape index: {}]
  %s11 = inlined_call_operand.vmem [shape: f32[1,3], index: 11, kind: input, shape index: {}]
  %s12 = inlined_call_operand.vmem [shape: f32[8,3], index: 12, kind: output, shape index: {}]
  %s13 = sld [smem:[#allocation0]]
  $region58: #{dnn_model_forward.1} parent=0
    _
  %s15 = ssub.s32 1, %s13
  %s16 = scalar_select 0, %s15, %s13
  // Predicated region
  $region2: #{dnn_model_forward.1} parent=0 // pred_check
    _
  $region3: #{dnn_model_forward.1} parent=0 // pred_check_branch
    %18 = sbr.rel (0) target = $region5
  $region4: #{dnn_model_forward.1} parent=0 // pred_region
    _
  $region5: #{dnn_model_forward.1} parent=0 // pred_fallthru
    _
  // Predicated region
  $region6: #{dnn_model_forward.1} parent=0 // pred_check
    _
  $region7: #{dnn_model_forward.1} parent=0 // pred_check_branch
    %20 = sbr.rel (0) target = $region9
  $region8: #{dnn_model_forward.1} parent=0 // pred_region
    _
  $region9: #{dnn_model_forward.1} parent=0 // pred_fallthru
    _
  // Predicated region
  $region10: #{dnn_model_forward.1} parent=0 // pred_check
    _
  $region11: #{dnn_model_forward.1} parent=0 // pred_check_branch
    %22 = sbr.rel (0) target = $region13
  $region12: #{dnn_model_forward.1} parent=0 // pred_region
    _
  $region13: #{dnn_model_forward.1} parent=0 // pred_fallthru
    _
  // Predicated region
  $region14: #{dnn_model_forward.1} parent=0 // pred_check
    _
  $region15: #{dnn_model_forward.1} parent=0 // pred_check_branch
    %24 = sbr.rel (0) target = $region17
  $region16: #{dnn_model_forward.1} parent=0 // pred_region
    _
  $region17: #{dnn_model_forward.1} parent=0 // pred_fallthru
    _
  // Predicated region
  $region18: #{dnn_model_forward.1} parent=0 // pred_check
    _
  $region19: #{dnn_model_forward.1} parent=0 // pred_check_branch
    %26 = sbr.rel (0) target = $region21
  $region20: #{dnn_model_forward.1} parent=0 // pred_region
    _
  $region21: #{dnn_model_forward.1} parent=0 // pred_fallthru
    _
  // Predicated region
  $region22: #{dnn_model_forward.1} parent=0 // pred_check
    _
  $region23: #{dnn_model_forward.1} parent=0 // pred_check_branch
    %28 = sbr.rel (0) target = $region25
  $region24: #{dnn_model_forward.1} parent=0 // pred_region
    _
  $region25: #{dnn_model_forward.1} parent=0 // pred_fallthru
    _
  // Predicated region
  $region26: #{dnn_model_forward.1} parent=0 // pred_check
    _
  $region27: #{dnn_model_forward.1} parent=0 // pred_check_branch
    %30 = sbr.rel (0) target = $region29
  $region28: #{dnn_model_forward.1} parent=0 // pred_region
    _
  $region29: #{dnn_model_forward.1} parent=0 // pred_fallthru
    _
  // Predicated region
  $region30: #{dnn_model_forward.1} parent=0 // pred_check
    _
  $region31: #{dnn_model_forward.1} parent=0 // pred_check_branch
    %32 = sbr.rel (0) target = $region33
  $region32: #{dnn_model_forward.1} parent=0 // pred_region
    _
  $region33: #{dnn_model_forward.1} parent=0 // pred_fallthru
    _
  // Predicated region
  $region34: #{dnn_model_forward.1} parent=0 // pred_check
    _
  $region35: #{dnn_model_forward.1} parent=0 // pred_check_branch
    %34 = sbr.rel (0) target = $region37
  $region36: #{dnn_model_forward.1} parent=0 // pred_region
    _
  $region37: #{dnn_model_forward.1} parent=0 // pred_fallthru
    _
  // Predicated region
  $region38: #{dnn_model_forward.1} parent=0 // pred_check
    _
  $region39: #{dnn_model_forward.1} parent=0 // pred_check_branch
    %36 = sbr.rel (0) target = $region41
  $region40: #{dnn_model_forward.1} parent=0 // pred_region
    _
  $region41: #{dnn_model_forward.1} parent=0 // pred_fallthru
    _
  // Predicated region
  $region42: #{dnn_model_forward.1} parent=0 // pred_check
    _
  $region43: #{dnn_model_forward.1} parent=0 // pred_check_branch
    %38 = sbr.rel (0) target = $region45
  $region44: #{dnn_model_forward.1} parent=0 // pred_region
    _
  $region45: #{dnn_model_forward.1} parent=0 // pred_fallthru
    _
  // Predicated region
  $region46: #{dnn_model_forward.1} parent=0 // pred_check
    _
  $region47: #{dnn_model_forward.1} parent=0 // pred_check_branch
    %40 = sbr.rel (0) target = $region49
  $region48: #{dnn_model_forward.1} parent=0 // pred_region
    _
  $region49: #{dnn_model_forward.1} parent=0 // pred_fallthru
    _
  %v41 = vlaneseq
  %v42 = vand.u32 %v41, 127
  %v43 = vadd.s32 %v42, 128
  %v44 = vld [vmem:[%s0] sm:$0xff]
  %45 = vset.pattern.permute.xlu0 0
  %46 = vperm.xlu0 %45, %v44
  %v47 = vpop.permute.xlu0 %46
  %vm48 = vcmp.eq.s32.totalorder %v42, %v47
  %vm49 = vcmp.eq.s32.totalorder %v43, %v47
  %v50 = vld [vmem:[%s1] sm:$0xff]
  %v51 = vadd.s32 %v50, 100
  %52 = vset.pattern.permute.xlu0 0
  %53 = vperm.xlu0 %52, %v51
  %v54 = vpop.permute.xlu0 %53
  %vm55 = vcmp.eq.s32.totalorder %v42, %v54
  %vm56 = vcmp.eq.s32.totalorder %v43, %v54
  %vm57 = vmor %vm48, %vm55
  %vm58 = vmor %vm49, %vm56
  %v59 = vld [vmem:[%s2] sm:$0xff]
  %v60 = vadd.s32 %v59, 150
  %61 = vset.pattern.permute.xlu0 0
  %62 = vperm.xlu0 %61, %v60
  %v63 = vpop.permute.xlu0 %62
  %vm64 = vcmp.eq.s32.totalorder %v42, %v63
  %vm65 = vcmp.eq.s32.totalorder %v43, %v63
  %vm66 = vmor %vm57, %vm64
  %vm67 = vmor %vm58, %vm65
  %v68 = vsel %vm66, 1, 0
  %v69 = vsel %vm67, 1, 0
  %v70 = vcvt.s32.f32 %v68
  %v71 = vcvt.s32.f32 %v69
  %v72 = vld [vmem:[%s4] sm:$0xff]
  %v73 = vld [vmem:[%s4 + $0x8] sm:$0xff]
  %v74 = vld [vmem:[%s4 + $0x10] sm:$0xff]
  %v75 = vld [vmem:[%s4 + $0x18] sm:$0xff]
  %v76 = vld [vmem:[%s4 + $0x20] sm:$0xff]
  %v77 = vld [vmem:[%s4 + $0x28] sm:$0xff]
  %v78 = vld [vmem:[%s4 + $0x30] sm:$0xff]
  %v79 = vld [vmem:[%s4 + $0x38] sm:$0xff]
  %v80 = vld [vmem:[%s4 + $0x40] sm:$0xff]
  %v81 = vld [vmem:[%s4 + $0x48] sm:$0xff]
  %v82 = vld [vmem:[%s4 + $0x50] sm:$0xff]
  %v83 = vld [vmem:[%s4 + $0x58] sm:$0xff]
  %v84 = vld [vmem:[%s4 + $0x60] sm:$0xff]
  %v85 = vld [vmem:[%s4 + $0x68] sm:$0xff]
  %v86 = vld [vmem:[%s4 + $0x70] sm:$0xff]
  %v87 = vld [vmem:[%s4 + $0x78] sm:$0xff]
  %v88 = vld [vmem:[%s4 + $0x80] sm:$0xff]
  %v89 = vld [vmem:[%s4 + $0x88] sm:$0xff]
  %v90 = vld [vmem:[%s4 + $0x90] sm:$0xff]
  %v91 = vld [vmem:[%s4 + $0x98] sm:$0xff]
  %v92 = vld [vmem:[%s4 + $0xa0] sm:$0xff]
  %v93 = vld [vmem:[%s4 + $0xa8] sm:$0xff]
  %v94 = vld [vmem:[%s4 + $0xb0] sm:$0xff]
  %v95 = vld [vmem:[%s4 + $0xb8] sm:$0xff]
  %v96 = vld [vmem:[%s4 + $0xc0] sm:$0xff]
  %v97 = vld [vmem:[%s4 + $0xc8] sm:$0xff]
  %v98 = vld [vmem:[%s4 + $0xd0] sm:$0xff]
  %v99 = vld [vmem:[%s4 + $0xd8] sm:$0xff]
  %v100 = vld [vmem:[%s4 + $0xe0] sm:$0xff]
  %v101 = vld [vmem:[%s4 + $0xe8] sm:$0xff]
  %v102 = vld [vmem:[%s4 + $0xf0] sm:$0xff]
  %v103 = vld [vmem:[%s4 + $0xf8] sm:$0xff]
  %104 = vmatprep.subr.mxu0 0.0
  %v105 = vand.u32 %v72, 4294901760
  %106 = vmatpush1.msra.mxu0 %v105
  %107 = vmatprep.subr.mxu0 0.0
  %v108 = vand.u32 %v73, 4294901760
  %109 = vmatpush1.msra.mxu0 %v108
  %110 = vmatprep.subr.mxu0 0.0
  %v111 = vand.u32 %v74, 4294901760
  %112 = vmatpush1.msra.mxu0 %v111
  %113 = vmatprep.subr.mxu0 0.0
  %v114 = vand.u32 %v75, 4294901760
  %115 = vmatpush1.msra.mxu0 %v114
  %116 = vmatprep.subr.mxu0 0.0
  %v117 = vand.u32 %v76, 4294901760
  %118 = vmatpush1.msra.mxu0 %v117
  %119 = vmatprep.subr.mxu0 0.0
  %v120 = vand.u32 %v77, 4294901760
  %121 = vmatpush1.msra.mxu0 %v120
  %122 = vmatprep.subr.mxu0 0.0
  %v123 = vand.u32 %v78, 4294901760
  %124 = vmatpush1.msra.mxu0 %v123
  %125 = vmatprep.subr.mxu0 0.0
  %v126 = vand.u32 %v79, 4294901760
  %127 = vmatpush1.msra.mxu0 %v126
  %128 = vmatprep.subr.mxu0 0.0
  %v129 = vand.u32 %v80, 4294901760
  %130 = vmatpush1.msra.mxu0 %v129
  %131 = vmatprep.subr.mxu0 0.0
  %v132 = vand.u32 %v81, 4294901760
  %133 = vmatpush1.msra.mxu0 %v132
  %134 = vmatprep.subr.mxu0 0.0
  %v135 = vand.u32 %v82, 4294901760
  %136 = vmatpush1.msra.mxu0 %v135
  %137 = vmatprep.subr.mxu0 0.0
  %v138 = vand.u32 %v83, 4294901760
  %139 = vmatpush1.msra.mxu0 %v138
  %140 = vmatprep.subr.mxu0 0.0
  %v141 = vand.u32 %v84, 4294901760
  %142 = vmatpush1.msra.mxu0 %v141
  %143 = vmatprep.subr.mxu0 0.0
  %v144 = vand.u32 %v85, 4294901760
  %145 = vmatpush1.msra.mxu0 %v144
  %146 = vmatprep.subr.mxu0 0.0
  %v147 = vand.u32 %v86, 4294901760
  %148 = vmatpush1.msra.mxu0 %v147
  %149 = vmatprep.subr.mxu0 0.0
  %v150 = vand.u32 %v87, 4294901760
  %151 = vmatpush1.msra.mxu0 %v150
  %152 = vmatprep.subr.mxu0 0.0
  %v153 = vand.u32 %v88, 4294901760
  %154 = vmatpush1.msra.mxu0 %v153
  %155 = vmatprep.subr.mxu0 0.0
  %v156 = vand.u32 %v89, 4294901760
  %157 = vmatpush1.msra.mxu0 %v156
  %158 = vmatprep.subr.mxu0 0.0
  %v159 = vand.u32 %v90, 4294901760
  %160 = vmatpush1.msra.mxu0 %v159
  %161 = vmatprep.subr.mxu0 0.0
  %v162 = vand.u32 %v91, 4294901760
  %163 = vmatpush1.msra.mxu0 %v162
  %164 = vmatprep.subr.mxu0 0.0
  %v165 = vand.u32 %v92, 4294901760
  %166 = vmatpush1.msra.mxu0 %v165
  %167 = vmatprep.subr.mxu0 0.0
  %v168 = vand.u32 %v93, 4294901760
  %169 = vmatpush1.msra.mxu0 %v168
  %170 = vmatprep.subr.mxu0 0.0
  %v171 = vand.u32 %v94, 4294901760
  %172 = vmatpush1.msra.mxu0 %v171
  %173 = vmatprep.subr.mxu0 0.0
  %v174 = vand.u32 %v95, 4294901760
  %175 = vmatpush1.msra.mxu0 %v174
  %176 = vmatprep.subr.mxu0 0.0
  %v177 = vand.u32 %v96, 4294901760
  %178 = vmatpush1.msra.mxu0 %v177
  %179 = vmatprep.subr.mxu0 0.0
  %v180 = vand.u32 %v97, 4294901760
  %181 = vmatpush1.msra.mxu0 %v180
  %182 = vmatprep.subr.mxu0 0.0
  %v183 = vand.u32 %v98, 4294901760
  %184 = vmatpush1.msra.mxu0 %v183
  %185 = vmatprep.subr.mxu0 0.0
  %v186 = vand.u32 %v99, 4294901760
  %187 = vmatpush1.msra.mxu0 %v186
  %188 = vmatprep.subr.mxu0 0.0
  %v189 = vand.u32 %v100, 4294901760
  %190 = vmatpush1.msra.mxu0 %v189
  %191 = vmatprep.subr.mxu0 0.0
  %v192 = vand.u32 %v101, 4294901760
  %193 = vmatpush1.msra.mxu0 %v192
  %194 = vmatprep.subr.mxu0 0.0
  %v195 = vand.u32 %v102, 4294901760
  %196 = vmatpush1.msra.mxu0 %v195
  %197 = vmatprep.subr.mxu0 0.0
  %v198 = vand.u32 %v103, 4294901760
  %199 = vmatpush1.msra.mxu0 %v198
  %v200 = vand.u32 %v71, 4294901760
  %v201 = vsub.f32 %v71, %v200
  %v202 = vand.u32 %v201, 4294901760
  %v203 = vsub.f32 %v201, %v202
  %v204 = vand.u32 %v203, 4294901760
  %205 = vmatprep.mubr.f32.mxu0 %v204
  %v206 = vand.u32 %v70, 4294901760
  %v207 = vsub.f32 %v70, %v206
  %v208 = vand.u32 %v207, 4294901760
  %v209 = vsub.f32 %v207, %v208
  %v210 = vand.u32 %v209, 4294901760
  %211 = vmatmul.mubr.f32.gmra.mrb[0].mxu0 %v210
  %v212 = vpop.f32.mrb[0].mxu0
  %v213 = vadd.f32 0.0, %v212
  %v214 = vpop.f32.mrb[0].mxu0
  %215 = vdwg.mxu0
  %216 = vmatprep.subr.mxu0 0.0
  %v217 = vand.u32 %v72, 4294901760
  %v218 = vsub.f32 %v72, %v217
  %v219 = vand.u32 %v218, 4294901760
  %v220 = vsub.f32 %v218, %v219
  %v221 = vand.u32 %v220, 4294901760
  %222 = vmatpush1.msra.mxu0 %v221
  %223 = vmatprep.subr.mxu0 0.0
  %v224 = vand.u32 %v73, 4294901760
  %v225 = vsub.f32 %v73, %v224
  %v226 = vand.u32 %v225, 4294901760
  %v227 = vsub.f32 %v225, %v226
  %v228 = vand.u32 %v227, 4294901760
  %229 = vmatpush1.msra.mxu0 %v228
  %230 = vmatprep.subr.mxu0 0.0
  %v231 = vand.u32 %v74, 4294901760
  %v232 = vsub.f32 %v74, %v231
  %v233 = vand.u32 %v232, 4294901760
  %v234 = vsub.f32 %v232, %v233
  %v235 = vand.u32 %v234, 4294901760
  %236 = vmatpush1.msra.mxu0 %v235
  %237 = vmatprep.subr.mxu0 0.0
  %v238 = vand.u32 %v75, 4294901760
  %v239 = vsub.f32 %v75, %v238
  %v240 = vand.u32 %v239, 4294901760
  %v241 = vsub.f32 %v239, %v240
  %v242 = vand.u32 %v241, 4294901760
  %243 = vmatpush1.msra.mxu0 %v242
  %244 = vmatprep.subr.mxu0 0.0
  %v245 = vand.u32 %v76, 4294901760
  %v246 = vsub.f32 %v76, %v245
  %v247 = vand.u32 %v246, 4294901760
  %v248 = vsub.f32 %v246, %v247
  %v249 = vand.u32 %v248, 4294901760
  %250 = vmatpush1.msra.mxu0 %v249
  %251 = vmatprep.subr.mxu0 0.0
  %v252 = vand.u32 %v77, 4294901760
  %v253 = vsub.f32 %v77, %v252
  %v254 = vand.u32 %v253, 4294901760
  %v255 = vsub.f32 %v253, %v254
  %v256 = vand.u32 %v255, 4294901760
  %257 = vmatpush1.msra.mxu0 %v256
  %258 = vmatprep.subr.mxu0 0.0
  %v259 = vand.u32 %v78, 4294901760
  %v260 = vsub.f32 %v78, %v259
  %v261 = vand.u32 %v260, 4294901760
  %v262 = vsub.f32 %v260, %v261
  %v263 = vand.u32 %v262, 4294901760
  %264 = vmatpush1.msra.mxu0 %v263
  %265 = vmatprep.subr.mxu0 0.0
  %v266 = vand.u32 %v79, 4294901760
  %v267 = vsub.f32 %v79, %v266
  %v268 = vand.u32 %v267, 4294901760
  %v269 = vsub.f32 %v267, %v268
  %v270 = vand.u32 %v269, 4294901760
  %271 = vmatpush1.msra.mxu0 %v270
  %272 = vmatprep.subr.mxu0 0.0
  %v273 = vand.u32 %v80, 4294901760
  %v274 = vsub.f32 %v80, %v273
  %v275 = vand.u32 %v274, 4294901760
  %v276 = vsub.f32 %v274, %v275
  %v277 = vand.u32 %v276, 4294901760
  %278 = vmatpush1.msra.mxu0 %v277
  %279 = vmatprep.subr.mxu0 0.0
  %v280 = vand.u32 %v81, 4294901760
  %v281 = vsub.f32 %v81, %v280
  %v282 = vand.u32 %v281, 4294901760
  %v283 = vsub.f32 %v281, %v282
  %v284 = vand.u32 %v283, 4294901760
  %285 = vmatpush1.msra.mxu0 %v284
  %286 = vmatprep.subr.mxu0 0.0
  %v287 = vand.u32 %v82, 4294901760
  %v288 = vsub.f32 %v82, %v287
  %v289 = vand.u32 %v288, 4294901760
  %v290 = vsub.f32 %v288, %v289
  %v291 = vand.u32 %v290, 4294901760
  %292 = vmatpush1.msra.mxu0 %v291
  %293 = vmatprep.subr.mxu0 0.0
  %v294 = vand.u32 %v83, 4294901760
  %v295 = vsub.f32 %v83, %v294
  %v296 = vand.u32 %v295, 4294901760
  %v297 = vsub.f32 %v295, %v296
  %v298 = vand.u32 %v297, 4294901760
  %299 = vmatpush1.msra.mxu0 %v298
  %300 = vmatprep.subr.mxu0 0.0
  %v301 = vand.u32 %v84, 4294901760
  %v302 = vsub.f32 %v84, %v301
  %v303 = vand.u32 %v302, 4294901760
  %v304 = vsub.f32 %v302, %v303
  %v305 = vand.u32 %v304, 4294901760
  %306 = vmatpush1.msra.mxu0 %v305
  %307 = vmatprep.subr.mxu0 0.0
  %v308 = vand.u32 %v85, 4294901760
  %v309 = vsub.f32 %v85, %v308
  %v310 = vand.u32 %v309, 4294901760
  %v311 = vsub.f32 %v309, %v310
  %v312 = vand.u32 %v311, 4294901760
  %313 = vmatpush1.msra.mxu0 %v312
  %314 = vmatprep.subr.mxu0 0.0
  %v315 = vand.u32 %v86, 4294901760
  %v316 = vsub.f32 %v86, %v315
  %v317 = vand.u32 %v316, 4294901760
  %v318 = vsub.f32 %v316, %v317
  %v319 = vand.u32 %v318, 4294901760
  %320 = vmatpush1.msra.mxu0 %v319
  %321 = vmatprep.subr.mxu0 0.0
  %v322 = vand.u32 %v87, 4294901760
  %v323 = vsub.f32 %v87, %v322
  %v324 = vand.u32 %v323, 4294901760
  %v325 = vsub.f32 %v323, %v324
  %v326 = vand.u32 %v325, 4294901760
  %327 = vmatpush1.msra.mxu0 %v326
  %328 = vmatprep.subr.mxu0 0.0
  %v329 = vand.u32 %v88, 4294901760
  %v330 = vsub.f32 %v88, %v329
  %v331 = vand.u32 %v330, 4294901760
  %v332 = vsub.f32 %v330, %v331
  %v333 = vand.u32 %v332, 4294901760
  %334 = vmatpush1.msra.mxu0 %v333
  %335 = vmatprep.subr.mxu0 0.0
  %v336 = vand.u32 %v89, 4294901760
  %v337 = vsub.f32 %v89, %v336
  %v338 = vand.u32 %v337, 4294901760
  %v339 = vsub.f32 %v337, %v338
  %v340 = vand.u32 %v339, 4294901760
  %341 = vmatpush1.msra.mxu0 %v340
  %342 = vmatprep.subr.mxu0 0.0
  %v343 = vand.u32 %v90, 4294901760
  %v344 = vsub.f32 %v90, %v343
  %v345 = vand.u32 %v344, 4294901760
  %v346 = vsub.f32 %v344, %v345
  %v347 = vand.u32 %v346, 4294901760
  %348 = vmatpush1.msra.mxu0 %v347
  %349 = vmatprep.subr.mxu0 0.0
  %v350 = vand.u32 %v91, 4294901760
  %v351 = vsub.f32 %v91, %v350
  %v352 = vand.u32 %v351, 4294901760
  %v353 = vsub.f32 %v351, %v352
  %v354 = vand.u32 %v353, 4294901760
  %355 = vmatpush1.msra.mxu0 %v354
  %356 = vmatprep.subr.mxu0 0.0
  %v357 = vand.u32 %v92, 4294901760
  %v358 = vsub.f32 %v92, %v357
  %v359 = vand.u32 %v358, 4294901760
  %v360 = vsub.f32 %v358, %v359
  %v361 = vand.u32 %v360, 4294901760
  %362 = vmatpush1.msra.mxu0 %v361
  %363 = vmatprep.subr.mxu0 0.0
  %v364 = vand.u32 %v93, 4294901760
  %v365 = vsub.f32 %v93, %v364
  %v366 = vand.u32 %v365, 4294901760
  %v367 = vsub.f32 %v365, %v366
  %v368 = vand.u32 %v367, 4294901760
  %369 = vmatpush1.msra.mxu0 %v368
  %370 = vmatprep.subr.mxu0 0.0
  %v371 = vand.u32 %v94, 4294901760
  %v372 = vsub.f32 %v94, %v371
  %v373 = vand.u32 %v372, 4294901760
  %v374 = vsub.f32 %v372, %v373
  %v375 = vand.u32 %v374, 4294901760
  %376 = vmatpush1.msra.mxu0 %v375
  %377 = vmatprep.subr.mxu0 0.0
  %v378 = vand.u32 %v95, 4294901760
  %v379 = vsub.f32 %v95, %v378
  %v380 = vand.u32 %v379, 4294901760
  %v381 = vsub.f32 %v379, %v380
  %v382 = vand.u32 %v381, 4294901760
  %383 = vmatpush1.msra.mxu0 %v382
  %384 = vmatprep.subr.mxu0 0.0
  %v385 = vand.u32 %v96, 4294901760
  %v386 = vsub.f32 %v96, %v385
  %v387 = vand.u32 %v386, 4294901760
  %v388 = vsub.f32 %v386, %v387
  %v389 = vand.u32 %v388, 4294901760
  %390 = vmatpush1.msra.mxu0 %v389
  %391 = vmatprep.subr.mxu0 0.0
  %v392 = vand.u32 %v97, 4294901760
  %v393 = vsub.f32 %v97, %v392
  %v394 = vand.u32 %v393, 4294901760
  %v395 = vsub.f32 %v393, %v394
  %v396 = vand.u32 %v395, 4294901760
  %397 = vmatpush1.msra.mxu0 %v396
  %398 = vmatprep.subr.mxu0 0.0
  %v399 = vand.u32 %v98, 4294901760
  %v400 = vsub.f32 %v98, %v399
  %v401 = vand.u32 %v400, 4294901760
  %v402 = vsub.f32 %v400, %v401
  %v403 = vand.u32 %v402, 4294901760
  %404 = vmatpush1.msra.mxu0 %v403
  %405 = vmatprep.subr.mxu0 0.0
  %v406 = vand.u32 %v99, 4294901760
  %v407 = vsub.f32 %v99, %v406
  %v408 = vand.u32 %v407, 4294901760
  %v409 = vsub.f32 %v407, %v408
  %v410 = vand.u32 %v409, 4294901760
  %411 = vmatpush1.msra.mxu0 %v410
  %412 = vmatprep.subr.mxu0 0.0
  %v413 = vand.u32 %v100, 4294901760
  %v414 = vsub.f32 %v100, %v413
  %v415 = vand.u32 %v414, 4294901760
  %v416 = vsub.f32 %v414, %v415
  %v417 = vand.u32 %v416, 4294901760
  %418 = vmatpush1.msra.mxu0 %v417
  %419 = vmatprep.subr.mxu0 0.0
  %v420 = vand.u32 %v101, 4294901760
  %v421 = vsub.f32 %v101, %v420
  %v422 = vand.u32 %v421, 4294901760
  %v423 = vsub.f32 %v421, %v422
  %v424 = vand.u32 %v423, 4294901760
  %425 = vmatpush1.msra.mxu0 %v424
  %426 = vmatprep.subr.mxu0 0.0
  %v427 = vand.u32 %v102, 4294901760
  %v428 = vsub.f32 %v102, %v427
  %v429 = vand.u32 %v428, 4294901760
  %v430 = vsub.f32 %v428, %v429
  %v431 = vand.u32 %v430, 4294901760
  %432 = vmatpush1.msra.mxu0 %v431
  %433 = vmatprep.subr.mxu0 0.0
  %v434 = vand.u32 %v103, 4294901760
  %v435 = vsub.f32 %v103, %v434
  %v436 = vand.u32 %v435, 4294901760
  %v437 = vsub.f32 %v435, %v436
  %v438 = vand.u32 %v437, 4294901760
  %439 = vmatpush1.msra.mxu0 %v438
  %v440 = vand.u32 %v71, 4294901760
  %441 = vmatprep.mubr.f32.mxu0 %v440
  %v442 = vand.u32 %v70, 4294901760
  %443 = vmatmul.mubr.f32.gmra.mrb[0].mxu0 %v442
  %v444 = vpop.f32.mrb[0].mxu0
  %v445 = vadd.f32 %v213, %v444
  %v446 = vpop.f32.mrb[0].mxu0
  %447 = vdwg.mxu0
  %448 = vmatprep.subr.mxu0 0.0
  %v449 = vand.u32 %v72, 4294901760
  %v450 = vsub.f32 %v72, %v449
  %451 = vmatpush1.msra.mxu0 %v450
  %452 = vmatprep.subr.mxu0 0.0
  %v453 = vand.u32 %v73, 4294901760
  %v454 = vsub.f32 %v73, %v453
  %455 = vmatpush1.msra.mxu0 %v454
  %456 = vmatprep.subr.mxu0 0.0
  %v457 = vand.u32 %v74, 4294901760
  %v458 = vsub.f32 %v74, %v457
  %459 = vmatpush1.msra.mxu0 %v458
  %460 = vmatprep.subr.mxu0 0.0
  %v461 = vand.u32 %v75, 4294901760
  %v462 = vsub.f32 %v75, %v461
  %463 = vmatpush1.msra.mxu0 %v462
  %464 = vmatprep.subr.mxu0 0.0
  %v465 = vand.u32 %v76, 4294901760
  %v466 = vsub.f32 %v76, %v465
  %467 = vmatpush1.msra.mxu0 %v466
  %468 = vmatprep.subr.mxu0 0.0
  %v469 = vand.u32 %v77, 4294901760
  %v470 = vsub.f32 %v77, %v469
  %471 = vmatpush1.msra.mxu0 %v470
  %472 = vmatprep.subr.mxu0 0.0
  %v473 = vand.u32 %v78, 4294901760
  %v474 = vsub.f32 %v78, %v473
  %475 = vmatpush1.msra.mxu0 %v474
  %476 = vmatprep.subr.mxu0 0.0
  %v477 = vand.u32 %v79, 4294901760
  %v478 = vsub.f32 %v79, %v477
  %479 = vmatpush1.msra.mxu0 %v478
  %480 = vmatprep.subr.mxu0 0.0
  %v481 = vand.u32 %v80, 4294901760
  %v482 = vsub.f32 %v80, %v481
  %483 = vmatpush1.msra.mxu0 %v482
  %484 = vmatprep.subr.mxu0 0.0
  %v485 = vand.u32 %v81, 4294901760
  %v486 = vsub.f32 %v81, %v485
  %487 = vmatpush1.msra.mxu0 %v486
  %488 = vmatprep.subr.mxu0 0.0
  %v489 = vand.u32 %v82, 4294901760
  %v490 = vsub.f32 %v82, %v489
  %491 = vmatpush1.msra.mxu0 %v490
  %492 = vmatprep.subr.mxu0 0.0
  %v493 = vand.u32 %v83, 4294901760
  %v494 = vsub.f32 %v83, %v493
  %495 = vmatpush1.msra.mxu0 %v494
  %496 = vmatprep.subr.mxu0 0.0
  %v497 = vand.u32 %v84, 4294901760
  %v498 = vsub.f32 %v84, %v497
  %499 = vmatpush1.msra.mxu0 %v498
  %500 = vmatprep.subr.mxu0 0.0
  %v501 = vand.u32 %v85, 4294901760
  %v502 = vsub.f32 %v85, %v501
  %503 = vmatpush1.msra.mxu0 %v502
  %504 = vmatprep.subr.mxu0 0.0
  %v505 = vand.u32 %v86, 4294901760
  %v506 = vsub.f32 %v86, %v505
  %507 = vmatpush1.msra.mxu0 %v506
  %508 = vmatprep.subr.mxu0 0.0
  %v509 = vand.u32 %v87, 4294901760
  %v510 = vsub.f32 %v87, %v509
  %511 = vmatpush1.msra.mxu0 %v510
  %512 = vmatprep.subr.mxu0 0.0
  %v513 = vand.u32 %v88, 4294901760
  %v514 = vsub.f32 %v88, %v513
  %515 = vmatpush1.msra.mxu0 %v514
  %516 = vmatprep.subr.mxu0 0.0
  %v517 = vand.u32 %v89, 4294901760
  %v518 = vsub.f32 %v89, %v517
  %519 = vmatpush1.msra.mxu0 %v518
  %520 = vmatprep.subr.mxu0 0.0
  %v521 = vand.u32 %v90, 4294901760
  %v522 = vsub.f32 %v90, %v521
  %523 = vmatpush1.msra.mxu0 %v522
  %524 = vmatprep.subr.mxu0 0.0
  %v525 = vand.u32 %v91, 4294901760
  %v526 = vsub.f32 %v91, %v525
  %527 = vmatpush1.msra.mxu0 %v526
  %528 = vmatprep.subr.mxu0 0.0
  %v529 = vand.u32 %v92, 4294901760
  %v530 = vsub.f32 %v92, %v529
  %531 = vmatpush1.msra.mxu0 %v530
  %532 = vmatprep.subr.mxu0 0.0
  %v533 = vand.u32 %v93, 4294901760
  %v534 = vsub.f32 %v93, %v533
  %535 = vmatpush1.msra.mxu0 %v534
  %536 = vmatprep.subr.mxu0 0.0
  %v537 = vand.u32 %v94, 4294901760
  %v538 = vsub.f32 %v94, %v537
  %539 = vmatpush1.msra.mxu0 %v538
  %540 = vmatprep.subr.mxu0 0.0
  %v541 = vand.u32 %v95, 4294901760
  %v542 = vsub.f32 %v95, %v541
  %543 = vmatpush1.msra.mxu0 %v542
  %544 = vmatprep.subr.mxu0 0.0
  %v545 = vand.u32 %v96, 4294901760
  %v546 = vsub.f32 %v96, %v545
  %547 = vmatpush1.msra.mxu0 %v546
  %548 = vmatprep.subr.mxu0 0.0
  %v549 = vand.u32 %v97, 4294901760
  %v550 = vsub.f32 %v97, %v549
  %551 = vmatpush1.msra.mxu0 %v550
  %552 = vmatprep.subr.mxu0 0.0
  %v553 = vand.u32 %v98, 4294901760
  %v554 = vsub.f32 %v98, %v553
  %555 = vmatpush1.msra.mxu0 %v554
  %556 = vmatprep.subr.mxu0 0.0
  %v557 = vand.u32 %v99, 4294901760
  %v558 = vsub.f32 %v99, %v557
  %559 = vmatpush1.msra.mxu0 %v558
  %560 = vmatprep.subr.mxu0 0.0
  %v561 = vand.u32 %v100, 4294901760
  %v562 = vsub.f32 %v100, %v561
  %563 = vmatpush1.msra.mxu0 %v562
  %564 = vmatprep.subr.mxu0 0.0
  %v565 = vand.u32 %v101, 4294901760
  %v566 = vsub.f32 %v101, %v565
  %567 = vmatpush1.msra.mxu0 %v566
  %568 = vmatprep.subr.mxu0 0.0
  %v569 = vand.u32 %v102, 4294901760
  %v570 = vsub.f32 %v102, %v569
  %571 = vmatpush1.msra.mxu0 %v570
  %572 = vmatprep.subr.mxu0 0.0
  %v573 = vand.u32 %v103, 4294901760
  %v574 = vsub.f32 %v103, %v573
  %575 = vmatpush1.msra.mxu0 %v574
  %v576 = vand.u32 %v71, 4294901760
  %v577 = vsub.f32 %v71, %v576
  %578 = vmatprep.mubr.f32.mxu0 %v577
  %v579 = vand.u32 %v70, 4294901760
  %v580 = vsub.f32 %v70, %v579
  %581 = vmatmul.mubr.f32.gmra.mrb[0].mxu0 %v580
  %v582 = vpop.f32.mrb[0].mxu0
  %v583 = vadd.f32 %v445, %v582
  %v584 = vpop.f32.mrb[0].mxu0
  %585 = vdwg.mxu0
  %586 = vmatprep.subr.mxu0 0.0
  %v587 = vand.u32 %v72, 4294901760
  %588 = vmatpush1.msra.mxu0 %v587
  %589 = vmatprep.subr.mxu0 0.0
  %v590 = vand.u32 %v73, 4294901760
  %591 = vmatpush1.msra.mxu0 %v590
  %592 = vmatprep.subr.mxu0 0.0
  %v593 = vand.u32 %v74, 4294901760
  %594 = vmatpush1.msra.mxu0 %v593
  %595 = vmatprep.subr.mxu0 0.0
  %v596 = vand.u32 %v75, 4294901760
  %597 = vmatpush1.msra.mxu0 %v596
  %598 = vmatprep.subr.mxu0 0.0
  %v599 = vand.u32 %v76, 4294901760
  %600 = vmatpush1.msra.mxu0 %v599
  %601 = vmatprep.subr.mxu0 0.0
  %v602 = vand.u32 %v77, 4294901760
  %603 = vmatpush1.msra.mxu0 %v602
  %604 = vmatprep.subr.mxu0 0.0
  %v605 = vand.u32 %v78, 4294901760
  %606 = vmatpush1.msra.mxu0 %v605
  %607 = vmatprep.subr.mxu0 0.0
  %v608 = vand.u32 %v79, 4294901760
  %609 = vmatpush1.msra.mxu0 %v608
  %610 = vmatprep.subr.mxu0 0.0
  %v611 = vand.u32 %v80, 4294901760
  %612 = vmatpush1.msra.mxu0 %v611
  %613 = vmatprep.subr.mxu0 0.0
  %v614 = vand.u32 %v81, 4294901760
  %615 = vmatpush1.msra.mxu0 %v614
  %616 = vmatprep.subr.mxu0 0.0
  %v617 = vand.u32 %v82, 4294901760
  %618 = vmatpush1.msra.mxu0 %v617
  %619 = vmatprep.subr.mxu0 0.0
  %v620 = vand.u32 %v83, 4294901760
  %621 = vmatpush1.msra.mxu0 %v620
  %622 = vmatprep.subr.mxu0 0.0
  %v623 = vand.u32 %v84, 4294901760
  %624 = vmatpush1.msra.mxu0 %v623
  %625 = vmatprep.subr.mxu0 0.0
  %v626 = vand.u32 %v85, 4294901760
  %627 = vmatpush1.msra.mxu0 %v626
  %628 = vmatprep.subr.mxu0 0.0
  %v629 = vand.u32 %v86, 4294901760
  %630 = vmatpush1.msra.mxu0 %v629
  %631 = vmatprep.subr.mxu0 0.0
  %v632 = vand.u32 %v87, 4294901760
  %633 = vmatpush1.msra.mxu0 %v632
  %634 = vmatprep.subr.mxu0 0.0
  %v635 = vand.u32 %v88, 4294901760
  %636 = vmatpush1.msra.mxu0 %v635
  %637 = vmatprep.subr.mxu0 0.0
  %v638 = vand.u32 %v89, 4294901760
  %639 = vmatpush1.msra.mxu0 %v638
  %640 = vmatprep.subr.mxu0 0.0
  %v641 = vand.u32 %v90, 4294901760
  %642 = vmatpush1.msra.mxu0 %v641
  %643 = vmatprep.subr.mxu0 0.0
  %v644 = vand.u32 %v91, 4294901760
  %645 = vmatpush1.msra.mxu0 %v644
  %646 = vmatprep.subr.mxu0 0.0
  %v647 = vand.u32 %v92, 4294901760
  %648 = vmatpush1.msra.mxu0 %v647
  %649 = vmatprep.subr.mxu0 0.0
  %v650 = vand.u32 %v93, 4294901760
  %651 = vmatpush1.msra.mxu0 %v650
  %652 = vmatprep.subr.mxu0 0.0
  %v653 = vand.u32 %v94, 4294901760
  %654 = vmatpush1.msra.mxu0 %v653
  %655 = vmatprep.subr.mxu0 0.0
  %v656 = vand.u32 %v95, 4294901760
  %657 = vmatpush1.msra.mxu0 %v656
  %658 = vmatprep.subr.mxu0 0.0
  %v659 = vand.u32 %v96, 4294901760
  %660 = vmatpush1.msra.mxu0 %v659
  %661 = vmatprep.subr.mxu0 0.0
  %v662 = vand.u32 %v97, 4294901760
  %663 = vmatpush1.msra.mxu0 %v662
  %664 = vmatprep.subr.mxu0 0.0
  %v665 = vand.u32 %v98, 4294901760
  %666 = vmatpush1.msra.mxu0 %v665
  %667 = vmatprep.subr.mxu0 0.0
  %v668 = vand.u32 %v99, 4294901760
  %669 = vmatpush1.msra.mxu0 %v668
  %670 = vmatprep.subr.mxu0 0.0
  %v671 = vand.u32 %v100, 4294901760
  %672 = vmatpush1.msra.mxu0 %v671
  %673 = vmatprep.subr.mxu0 0.0
  %v674 = vand.u32 %v101, 4294901760
  %675 = vmatpush1.msra.mxu0 %v674
  %676 = vmatprep.subr.mxu0 0.0
  %v677 = vand.u32 %v102, 4294901760
  %678 = vmatpush1.msra.mxu0 %v677
  %679 = vmatprep.subr.mxu0 0.0
  %v680 = vand.u32 %v103, 4294901760
  %681 = vmatpush1.msra.mxu0 %v680
  %v682 = vand.u32 %v71, 4294901760
  %v683 = vsub.f32 %v71, %v682
  %v684 = vand.u32 %v683, 4294901760
  %685 = vmatprep.mubr.f32.mxu0 %v684
  %v686 = vand.u32 %v70, 4294901760
  %v687 = vsub.f32 %v70, %v686
  %v688 = vand.u32 %v687, 4294901760
  %689 = vmatmul.mubr.f32.gmra.mrb[0].mxu0 %v688
  %v690 = vpop.f32.mrb[0].mxu0
  %v691 = vadd.f32 %v583, %v690
  %v692 = vpop.f32.mrb[0].mxu0
  %693 = vdwg.mxu0
  %694 = vmatprep.subr.mxu0 0.0
  %v695 = vand.u32 %v72, 4294901760
  %v696 = vsub.f32 %v72, %v695
  %v697 = vand.u32 %v696, 4294901760
  %698 = vmatpush1.msra.mxu0 %v697
  %699 = vmatprep.subr.mxu0 0.0
  %v700 = vand.u32 %v73, 4294901760
  %v701 = vsub.f32 %v73, %v700
  %v702 = vand.u32 %v701, 4294901760
  %703 = vmatpush1.msra.mxu0 %v702
  %704 = vmatprep.subr.mxu0 0.0
  %v705 = vand.u32 %v74, 4294901760
  %v706 = vsub.f32 %v74, %v705
  %v707 = vand.u32 %v706, 4294901760
  %708 = vmatpush1.msra.mxu0 %v707
  %709 = vmatprep.subr.mxu0 0.0
  %v710 = vand.u32 %v75, 4294901760
  %v711 = vsub.f32 %v75, %v710
  %v712 = vand.u32 %v711, 4294901760
  %713 = vmatpush1.msra.mxu0 %v712
  %714 = vmatprep.subr.mxu0 0.0
  %v715 = vand.u32 %v76, 4294901760
  %v716 = vsub.f32 %v76, %v715
  %v717 = vand.u32 %v716, 4294901760
  %718 = vmatpush1.msra.mxu0 %v717
  %719 = vmatprep.subr.mxu0 0.0
  %v720 = vand.u32 %v77, 4294901760
  %v721 = vsub.f32 %v77, %v720
  %v722 = vand.u32 %v721, 4294901760
  %723 = vmatpush1.msra.mxu0 %v722
  %724 = vmatprep.subr.mxu0 0.0
  %v725 = vand.u32 %v78, 4294901760
  %v726 = vsub.f32 %v78, %v725
  %v727 = vand.u32 %v726, 4294901760
  %728 = vmatpush1.msra.mxu0 %v727
  %729 = vmatprep.subr.mxu0 0.0
  %v730 = vand.u32 %v79, 4294901760
  %v731 = vsub.f32 %v79, %v730
  %v732 = vand.u32 %v731, 4294901760
  %733 = vmatpush1.msra.mxu0 %v732
  %734 = vmatprep.subr.mxu0 0.0
  %v735 = vand.u32 %v80, 4294901760
  %v736 = vsub.f32 %v80, %v735
  %v737 = vand.u32 %v736, 4294901760
  %738 = vmatpush1.msra.mxu0 %v737
  %739 = vmatprep.subr.mxu0 0.0
  %v740 = vand.u32 %v81, 4294901760
  %v741 = vsub.f32 %v81, %v740
  %v742 = vand.u32 %v741, 4294901760
  %743 = vmatpush1.msra.mxu0 %v742
  %744 = vmatprep.subr.mxu0 0.0
  %v745 = vand.u32 %v82, 4294901760
  %v746 = vsub.f32 %v82, %v745
  %v747 = vand.u32 %v746, 4294901760
  %748 = vmatpush1.msra.mxu0 %v747
  %749 = vmatprep.subr.mxu0 0.0
  %v750 = vand.u32 %v83, 4294901760
  %v751 = vsub.f32 %v83, %v750
  %v752 = vand.u32 %v751, 4294901760
  %753 = vmatpush1.msra.mxu0 %v752
  %754 = vmatprep.subr.mxu0 0.0
  %v755 = vand.u32 %v84, 4294901760
  %v756 = vsub.f32 %v84, %v755
  %v757 = vand.u32 %v756, 4294901760
  %758 = vmatpush1.msra.mxu0 %v757
  %759 = vmatprep.subr.mxu0 0.0
  %v760 = vand.u32 %v85, 4294901760
  %v761 = vsub.f32 %v85, %v760
  %v762 = vand.u32 %v761, 4294901760
  %763 = vmatpush1.msra.mxu0 %v762
  %764 = vmatprep.subr.mxu0 0.0
  %v765 = vand.u32 %v86, 4294901760
  %v766 = vsub.f32 %v86, %v765
  %v767 = vand.u32 %v766, 4294901760
  %768 = vmatpush1.msra.mxu0 %v767
  %769 = vmatprep.subr.mxu0 0.0
  %v770 = vand.u32 %v87, 4294901760
  %v771 = vsub.f32 %v87, %v770
  %v772 = vand.u32 %v771, 4294901760
  %773 = vmatpush1.msra.mxu0 %v772
  %774 = vmatprep.subr.mxu0 0.0
  %v775 = vand.u32 %v88, 4294901760
  %v776 = vsub.f32 %v88, %v775
  %v777 = vand.u32 %v776, 4294901760
  %778 = vmatpush1.msra.mxu0 %v777
  %779 = vmatprep.subr.mxu0 0.0
  %v780 = vand.u32 %v89, 4294901760
  %v781 = vsub.f32 %v89, %v780
  %v782 = vand.u32 %v781, 4294901760
  %783 = vmatpush1.msra.mxu0 %v782
  %784 = vmatprep.subr.mxu0 0.0
  %v785 = vand.u32 %v90, 4294901760
  %v786 = vsub.f32 %v90, %v785
  %v787 = vand.u32 %v786, 4294901760
  %788 = vmatpush1.msra.mxu0 %v787
  %789 = vmatprep.subr.mxu0 0.0
  %v790 = vand.u32 %v91, 4294901760
  %v791 = vsub.f32 %v91, %v790
  %v792 = vand.u32 %v791, 4294901760
  %793 = vmatpush1.msra.mxu0 %v792
  %794 = vmatprep.subr.mxu0 0.0
  %v795 = vand.u32 %v92, 4294901760
  %v796 = vsub.f32 %v92, %v795
  %v797 = vand.u32 %v796, 4294901760
  %798 = vmatpush1.msra.mxu0 %v797
  %799 = vmatprep.subr.mxu0 0.0
  %v800 = vand.u32 %v93, 4294901760
  %v801 = vsub.f32 %v93, %v800
  %v802 = vand.u32 %v801, 4294901760
  %803 = vmatpush1.msra.mxu0 %v802
  %804 = vmatprep.subr.mxu0 0.0
  %v805 = vand.u32 %v94, 4294901760
  %v806 = vsub.f32 %v94, %v805
  %v807 = vand.u32 %v806, 4294901760
  %808 = vmatpush1.msra.mxu0 %v807
  %809 = vmatprep.subr.mxu0 0.0
  %v810 = vand.u32 %v95, 4294901760
  %v811 = vsub.f32 %v95, %v810
  %v812 = vand.u32 %v811, 4294901760
  %813 = vmatpush1.msra.mxu0 %v812
  %814 = vmatprep.subr.mxu0 0.0
  %v815 = vand.u32 %v96, 4294901760
  %v816 = vsub.f32 %v96, %v815
  %v817 = vand.u32 %v816, 4294901760
  %818 = vmatpush1.msra.mxu0 %v817
  %819 = vmatprep.subr.mxu0 0.0
  %v820 = vand.u32 %v97, 4294901760
  %v821 = vsub.f32 %v97, %v820
  %v822 = vand.u32 %v821, 4294901760
  %823 = vmatpush1.msra.mxu0 %v822
  %824 = vmatprep.subr.mxu0 0.0
  %v825 = vand.u32 %v98, 4294901760
  %v826 = vsub.f32 %v98, %v825
  %v827 = vand.u32 %v826, 4294901760
  %828 = vmatpush1.msra.mxu0 %v827
  %829 = vmatprep.subr.mxu0 0.0
  %v830 = vand.u32 %v99, 4294901760
  %v831 = vsub.f32 %v99, %v830
  %v832 = vand.u32 %v831, 4294901760
  %833 = vmatpush1.msra.mxu0 %v832
  %834 = vmatprep.subr.mxu0 0.0
  %v835 = vand.u32 %v100, 4294901760
  %v836 = vsub.f32 %v100, %v835
  %v837 = vand.u32 %v836, 4294901760
  %838 = vmatpush1.msra.mxu0 %v837
  %839 = vmatprep.subr.mxu0 0.0
  %v840 = vand.u32 %v101, 4294901760
  %v841 = vsub.f32 %v101, %v840
  %v842 = vand.u32 %v841, 4294901760
  %843 = vmatpush1.msra.mxu0 %v842
  %844 = vmatprep.subr.mxu0 0.0
  %v845 = vand.u32 %v102, 4294901760
  %v846 = vsub.f32 %v102, %v845
  %v847 = vand.u32 %v846, 4294901760
  %848 = vmatpush1.msra.mxu0 %v847
  %849 = vmatprep.subr.mxu0 0.0
  %v850 = vand.u32 %v103, 4294901760
  %v851 = vsub.f32 %v103, %v850
  %v852 = vand.u32 %v851, 4294901760
  %853 = vmatpush1.msra.mxu0 %v852
  %v854 = vand.u32 %v71, 4294901760
  %855 = vmatprep.mubr.f32.mxu0 %v854
  %v856 = vand.u32 %v70, 4294901760
  %857 = vmatmul.mubr.f32.gmra.mrb[0].mxu0 %v856
  %v858 = vpop.f32.mrb[0].mxu0
  %v859 = vadd.f32 %v691, %v858
  %v860 = vpop.f32.mrb[0].mxu0
  %861 = vdwg.mxu0
  %862 = vmatprep.subr.mxu0 0.0
  %v863 = vand.u32 %v72, 4294901760
  %864 = vmatpush1.msra.mxu0 %v863
  %865 = vmatprep.subr.mxu0 0.0
  %v866 = vand.u32 %v73, 4294901760
  %867 = vmatpush1.msra.mxu0 %v866
  %868 = vmatprep.subr.mxu0 0.0
  %v869 = vand.u32 %v74, 4294901760
  %870 = vmatpush1.msra.mxu0 %v869
  %871 = vmatprep.subr.mxu0 0.0
  %v872 = vand.u32 %v75, 4294901760
  %873 = vmatpush1.msra.mxu0 %v872
  %874 = vmatprep.subr.mxu0 0.0
  %v875 = vand.u32 %v76, 4294901760
  %876 = vmatpush1.msra.mxu0 %v875
  %877 = vmatprep.subr.mxu0 0.0
  %v878 = vand.u32 %v77, 4294901760
  %879 = vmatpush1.msra.mxu0 %v878
  %880 = vmatprep.subr.mxu0 0.0
  %v881 = vand.u32 %v78, 4294901760
  %882 = vmatpush1.msra.mxu0 %v881
  %883 = vmatprep.subr.mxu0 0.0
  %v884 = vand.u32 %v79, 4294901760
  %885 = vmatpush1.msra.mxu0 %v884
  %886 = vmatprep.subr.mxu0 0.0
  %v887 = vand.u32 %v80, 4294901760
  %888 = vmatpush1.msra.mxu0 %v887
  %889 = vmatprep.subr.mxu0 0.0
  %v890 = vand.u32 %v81, 4294901760
  %891 = vmatpush1.msra.mxu0 %v890
  %892 = vmatprep.subr.mxu0 0.0
  %v893 = vand.u32 %v82, 4294901760
  %894 = vmatpush1.msra.mxu0 %v893
  %895 = vmatprep.subr.mxu0 0.0
  %v896 = vand.u32 %v83, 4294901760
  %897 = vmatpush1.msra.mxu0 %v896
  %898 = vmatprep.subr.mxu0 0.0
  %v899 = vand.u32 %v84, 4294901760
  %900 = vmatpush1.msra.mxu0 %v899
  %901 = vmatprep.subr.mxu0 0.0
  %v902 = vand.u32 %v85, 4294901760
  %903 = vmatpush1.msra.mxu0 %v902
  %904 = vmatprep.subr.mxu0 0.0
  %v905 = vand.u32 %v86, 4294901760
  %906 = vmatpush1.msra.mxu0 %v905
  %907 = vmatprep.subr.mxu0 0.0
  %v908 = vand.u32 %v87, 4294901760
  %909 = vmatpush1.msra.mxu0 %v908
  %910 = vmatprep.subr.mxu0 0.0
  %v911 = vand.u32 %v88, 4294901760
  %912 = vmatpush1.msra.mxu0 %v911
  %913 = vmatprep.subr.mxu0 0.0
  %v914 = vand.u32 %v89, 4294901760
  %915 = vmatpush1.msra.mxu0 %v914
  %916 = vmatprep.subr.mxu0 0.0
  %v917 = vand.u32 %v90, 4294901760
  %918 = vmatpush1.msra.mxu0 %v917
  %919 = vmatprep.subr.mxu0 0.0
  %v920 = vand.u32 %v91, 4294901760
  %921 = vmatpush1.msra.mxu0 %v920
  %922 = vmatprep.subr.mxu0 0.0
  %v923 = vand.u32 %v92, 4294901760
  %924 = vmatpush1.msra.mxu0 %v923
  %925 = vmatprep.subr.mxu0 0.0
  %v926 = vand.u32 %v93, 4294901760
  %927 = vmatpush1.msra.mxu0 %v926
  %928 = vmatprep.subr.mxu0 0.0
  %v929 = vand.u32 %v94, 4294901760
  %930 = vmatpush1.msra.mxu0 %v929
  %931 = vmatprep.subr.mxu0 0.0
  %v932 = vand.u32 %v95, 4294901760
  %933 = vmatpush1.msra.mxu0 %v932
  %934 = vmatprep.subr.mxu0 0.0
  %v935 = vand.u32 %v96, 4294901760
  %936 = vmatpush1.msra.mxu0 %v935
  %937 = vmatprep.subr.mxu0 0.0
  %v938 = vand.u32 %v97, 4294901760
  %939 = vmatpush1.msra.mxu0 %v938
  %940 = vmatprep.subr.mxu0 0.0
  %v941 = vand.u32 %v98, 4294901760
  %942 = vmatpush1.msra.mxu0 %v941
  %943 = vmatprep.subr.mxu0 0.0
  %v944 = vand.u32 %v99, 4294901760
  %945 = vmatpush1.msra.mxu0 %v944
  %946 = vmatprep.subr.mxu0 0.0
  %v947 = vand.u32 %v100, 4294901760
  %948 = vmatpush1.msra.mxu0 %v947
  %949 = vmatprep.subr.mxu0 0.0
  %v950 = vand.u32 %v101, 4294901760
  %951 = vmatpush1.msra.mxu0 %v950
  %952 = vmatprep.subr.mxu0 0.0
  %v953 = vand.u32 %v102, 4294901760
  %954 = vmatpush1.msra.mxu0 %v953
  %955 = vmatprep.subr.mxu0 0.0
  %v956 = vand.u32 %v103, 4294901760
  %957 = vmatpush1.msra.mxu0 %v956
  %v958 = vand.u32 %v71, 4294901760
  %959 = vmatprep.mubr.f32.mxu0 %v958
  %v960 = vand.u32 %v70, 4294901760
  %961 = vmatmul.mubr.f32.gmra.mrb[0].mxu0 %v960
  %v962 = vpop.f32.mrb[0].mxu0
  %v963 = vadd.f32 %v859, %v962
  %v964 = vpop.f32.mrb[0].mxu0
  %965 = vdwg.mxu0
  %v966 = vld [vmem:[%s3] sm:$0xff]
  %v967 = vld [vmem:[%s5] sm:$0x1]
  %969 = vset.pattern.permute.xlu0 0
  %970 = vperm.xlu0 %969, %v966
  %v971 = vpop.permute.xlu0 %970
  %v974 = vlaneseq
  %v975 = vshrl.u32 %v974, 7
  %v976 = vsub.s32 0, %v975
  %v977 = vrot.slane %v967, %v976
  %v979 = vmul.f32 %v971, %v977
  %v980 = vld [vmem:[%s6] sm:$0xff]
  %v981 = vld [vmem:[%s6 + $0x8] sm:$0x3]
  %vm982 = vcmask 80896
  %v984 = vsel %vm982, %v963, 0
  %vm986 = vcmask 1041408
  %v988 = vsel %vm986, %v981, 0
  %990 = vmatprep.subr.mxu0 0.0
  %v991 = vand.u32 %v980, 4294901760
  %992 = vmatpush1.msra.mxu0 %v991
  %993 = vmatprep.subr.mxu0 0.0
  %v994 = vand.u32 %v988, 4294901760
  %995 = vmatpush1.msra.mxu0 %v994
  %996 = vmatprep.subr.mxu0 0.0
  %997 = vmatpush1.msra.mxu0 0.0
  %998 = vmatprep.subr.mxu0 0.0
  %999 = vmatpush1.msra.mxu0 0.0
  %1000 = vmatprep.subr.mxu0 0.0
  %1001 = vmatpush1.msra.mxu0 0.0
  %1002 = vmatprep.subr.mxu0 0.0
  %1003 = vmatpush1.msra.mxu0 0.0
  %1004 = vmatprep.subr.mxu0 0.0
  %1005 = vmatpush1.msra.mxu0 0.0
  %1006 = vmatprep.subr.mxu0 0.0
  %1007 = vmatpush1.msra.mxu0 0.0
  %1008 = vmatprep.subr.mxu0 0.0
  %1009 = vmatpush1.msra.mxu0 0.0
  %1010 = vmatprep.subr.mxu0 0.0
  %1011 = vmatpush1.msra.mxu0 0.0
  %1012 = vmatprep.subr.mxu0 0.0
  %1013 = vmatpush1.msra.mxu0 0.0
  %1014 = vmatprep.subr.mxu0 0.0
  %1015 = vmatpush1.msra.mxu0 0.0
  %1016 = vmatprep.subr.mxu0 0.0
  %1017 = vmatpush1.msra.mxu0 0.0
  %1018 = vmatprep.subr.mxu0 0.0
  %1019 = vmatpush1.msra.mxu0 0.0
  %1020 = vmatprep.subr.mxu0 0.0
  %1021 = vmatpush1.msra.mxu0 0.0
  %1022 = vmatprep.subr.mxu0 0.0
  %1023 = vmatpush1.msra.mxu0 0.0
  %1024 = vmatprep.subr.mxu0 0.0
  %1025 = vmatpush1.msra.mxu0 0.0
  %1026 = vmatprep.subr.mxu0 0.0
  %1027 = vmatpush1.msra.mxu0 0.0
  %1028 = vmatprep.subr.mxu0 0.0
  %1029 = vmatpush1.msra.mxu0 0.0
  %1030 = vmatprep.subr.mxu0 0.0
  %1031 = vmatpush1.msra.mxu0 0.0
  %1032 = vmatprep.subr.mxu0 0.0
  %1033 = vmatpush1.msra.mxu0 0.0
  %1034 = vmatprep.subr.mxu0 0.0
  %1035 = vmatpush1.msra.mxu0 0.0
  %1036 = vmatprep.subr.mxu0 0.0
  %1037 = vmatpush1.msra.mxu0 0.0
  %1038 = vmatprep.subr.mxu0 0.0
  %1039 = vmatpush1.msra.mxu0 0.0
  %1040 = vmatprep.subr.mxu0 0.0
  %1041 = vmatpush1.msra.mxu0 0.0
  %1042 = vmatprep.subr.mxu0 0.0
  %1043 = vmatpush1.msra.mxu0 0.0
  %1044 = vmatprep.subr.mxu0 0.0
  %1045 = vmatpush1.msra.mxu0 0.0
  %1046 = vmatprep.subr.mxu0 0.0
  %1047 = vmatpush1.msra.mxu0 0.0
  %1048 = vmatprep.subr.mxu0 0.0
  %1049 = vmatpush1.msra.mxu0 0.0
  %1050 = vmatprep.subr.mxu0 0.0
  %1051 = vmatpush1.msra.mxu0 0.0
  %1052 = vmatprep.subr.mxu0 0.0
  %1053 = vmatpush1.msra.mxu0 0.0
  %1054 = vmatprep.subr.mxu0 0.0
  %1055 = vmatpush1.msra.mxu0 0.0
  %1056 = vmatprep.mubr.f32.mxu0 0.0
  %v1057 = vand.u32 %v984, 4294901760
  %v1058 = vsub.f32 %v984, %v1057
  %v1059 = vand.u32 %v1058, 4294901760
  %v1060 = vsub.f32 %v1058, %v1059
  %v1061 = vand.u32 %v1060, 4294901760
  %1062 = vmatmul.mubr.f32.gmra.mrb[0].mxu0 %v1061
  %v1063 = vpop.f32.mrb[0].mxu0
  %v1064 = vadd.f32 0.0, %v1063
  %v1065 = vpop.f32.mrb[0].mxu0
  %1066 = vdwg.mxu0
  %1067 = vmatprep.subr.mxu0 0.0
  %v1068 = vand.u32 %v980, 4294901760
  %v1069 = vsub.f32 %v980, %v1068
  %v1070 = vand.u32 %v1069, 4294901760
  %v1071 = vsub.f32 %v1069, %v1070
  %v1072 = vand.u32 %v1071, 4294901760
  %1073 = vmatpush1.msra.mxu0 %v1072
  %1074 = vmatprep.subr.mxu0 0.0
  %v1075 = vand.u32 %v988, 4294901760
  %v1076 = vsub.f32 %v988, %v1075
  %v1077 = vand.u32 %v1076, 4294901760
  %v1078 = vsub.f32 %v1076, %v1077
  %v1079 = vand.u32 %v1078, 4294901760
  %1080 = vmatpush1.msra.mxu0 %v1079
  %1081 = vmatprep.subr.mxu0 0.0
  %1082 = vmatpush1.msra.mxu0 0.0
  %1083 = vmatprep.subr.mxu0 0.0
  %1084 = vmatpush1.msra.mxu0 0.0
  %1085 = vmatprep.subr.mxu0 0.0
  %1086 = vmatpush1.msra.mxu0 0.0
  %1087 = vmatprep.subr.mxu0 0.0
  %1088 = vmatpush1.msra.mxu0 0.0
  %1089 = vmatprep.subr.mxu0 0.0
  %1090 = vmatpush1.msra.mxu0 0.0
  %1091 = vmatprep.subr.mxu0 0.0
  %1092 = vmatpush1.msra.mxu0 0.0
  %1093 = vmatprep.subr.mxu0 0.0
  %1094 = vmatpush1.msra.mxu0 0.0
  %1095 = vmatprep.subr.mxu0 0.0
  %1096 = vmatpush1.msra.mxu0 0.0
  %1097 = vmatprep.subr.mxu0 0.0
  %1098 = vmatpush1.msra.mxu0 0.0
  %1099 = vmatprep.subr.mxu0 0.0
  %1100 = vmatpush1.msra.mxu0 0.0
  %1101 = vmatprep.subr.mxu0 0.0
  %1102 = vmatpush1.msra.mxu0 0.0
  %1103 = vmatprep.subr.mxu0 0.0
  %1104 = vmatpush1.msra.mxu0 0.0
  %1105 = vmatprep.subr.mxu0 0.0
  %1106 = vmatpush1.msra.mxu0 0.0
  %1107 = vmatprep.subr.mxu0 0.0
  %1108 = vmatpush1.msra.mxu0 0.0
  %1109 = vmatprep.subr.mxu0 0.0
  %1110 = vmatpush1.msra.mxu0 0.0
  %1111 = vmatprep.subr.mxu0 0.0
  %1112 = vmatpush1.msra.mxu0 0.0
  %1113 = vmatprep.subr.mxu0 0.0
  %1114 = vmatpush1.msra.mxu0 0.0
  %1115 = vmatprep.subr.mxu0 0.0
  %1116 = vmatpush1.msra.mxu0 0.0
  %1117 = vmatprep.subr.mxu0 0.0
  %1118 = vmatpush1.msra.mxu0 0.0
  %1119 = vmatprep.subr.mxu0 0.0
  %1120 = vmatpush1.msra.mxu0 0.0
  %1121 = vmatprep.subr.mxu0 0.0
  %1122 = vmatpush1.msra.mxu0 0.0
  %1123 = vmatprep.subr.mxu0 0.0
  %1124 = vmatpush1.msra.mxu0 0.0
  %1125 = vmatprep.subr.mxu0 0.0
  %1126 = vmatpush1.msra.mxu0 0.0
  %1127 = vmatprep.subr.mxu0 0.0
  %1128 = vmatpush1.msra.mxu0 0.0
  %1129 = vmatprep.subr.mxu0 0.0
  %1130 = vmatpush1.msra.mxu0 0.0
  %1131 = vmatprep.subr.mxu0 0.0
  %1132 = vmatpush1.msra.mxu0 0.0
  %1133 = vmatprep.subr.mxu0 0.0
  %1134 = vmatpush1.msra.mxu0 0.0
  %1135 = vmatprep.subr.mxu0 0.0
  %1136 = vmatpush1.msra.mxu0 0.0
  %1137 = vmatprep.subr.mxu0 0.0
  %1138 = vmatpush1.msra.mxu0 0.0
  %1139 = vmatprep.subr.mxu0 0.0
  %1140 = vmatpush1.msra.mxu0 0.0
  %1141 = vmatprep.mubr.f32.mxu0 0.0
  %v1142 = vand.u32 %v984, 4294901760
  %1143 = vmatmul.mubr.f32.gmra.mrb[0].mxu0 %v1142
  %v1144 = vpop.f32.mrb[0].mxu0
  %v1145 = vadd.f32 %v1064, %v1144
  %v1146 = vpop.f32.mrb[0].mxu0
  %1147 = vdwg.mxu0
  %1148 = vmatprep.subr.mxu0 0.0
  %v1149 = vand.u32 %v980, 4294901760
  %v1150 = vsub.f32 %v980, %v1149
  %1151 = vmatpush1.msra.mxu0 %v1150
  %1152 = vmatprep.subr.mxu0 0.0
  %v1153 = vand.u32 %v988, 4294901760
  %v1154 = vsub.f32 %v988, %v1153
  %1155 = vmatpush1.msra.mxu0 %v1154
  %1156 = vmatprep.subr.mxu0 0.0
  %1157 = vmatpush1.msra.mxu0 0.0
  %1158 = vmatprep.subr.mxu0 0.0
  %1159 = vmatpush1.msra.mxu0 0.0
  %1160 = vmatprep.subr.mxu0 0.0
  %1161 = vmatpush1.msra.mxu0 0.0
  %1162 = vmatprep.subr.mxu0 0.0
  %1163 = vmatpush1.msra.mxu0 0.0
  %1164 = vmatprep.subr.mxu0 0.0
  %1165 = vmatpush1.msra.mxu0 0.0
  %1166 = vmatprep.subr.mxu0 0.0
  %1167 = vmatpush1.msra.mxu0 0.0
  %1168 = vmatprep.subr.mxu0 0.0
  %1169 = vmatpush1.msra.mxu0 0.0
  %1170 = vmatprep.subr.mxu0 0.0
  %1171 = vmatpush1.msra.mxu0 0.0
  %1172 = vmatprep.subr.mxu0 0.0
  %1173 = vmatpush1.msra.mxu0 0.0
  %1174 = vmatprep.subr.mxu0 0.0
  %1175 = vmatpush1.msra.mxu0 0.0
  %1176 = vmatprep.subr.mxu0 0.0
  %1177 = vmatpush1.msra.mxu0 0.0
  %1178 = vmatprep.subr.mxu0 0.0
  %1179 = vmatpush1.msra.mxu0 0.0
  %1180 = vmatprep.subr.mxu0 0.0
  %1181 = vmatpush1.msra.mxu0 0.0
  %1182 = vmatprep.subr.mxu0 0.0
  %1183 = vmatpush1.msra.mxu0 0.0
  %1184 = vmatprep.subr.mxu0 0.0
  %1185 = vmatpush1.msra.mxu0 0.0
  %1186 = vmatprep.subr.mxu0 0.0
  %1187 = vmatpush1.msra.mxu0 0.0
  %1188 = vmatprep.subr.mxu0 0.0
  %1189 = vmatpush1.msra.mxu0 0.0
  %1190 = vmatprep.subr.mxu0 0.0
  %1191 = vmatpush1.msra.mxu0 0.0
  %1192 = vmatprep.subr.mxu0 0.0
  %1193 = vmatpush1.msra.mxu0 0.0
  %1194 = vmatprep.subr.mxu0 0.0
  %1195 = vmatpush1.msra.mxu0 0.0
  %1196 = vmatprep.subr.mxu0 0.0
  %1197 = vmatpush1.msra.mxu0 0.0
  %1198 = vmatprep.subr.mxu0 0.0
  %1199 = vmatpush1.msra.mxu0 0.0
  %1200 = vmatprep.subr.mxu0 0.0
  %1201 = vmatpush1.msra.mxu0 0.0
  %1202 = vmatprep.subr.mxu0 0.0
  %1203 = vmatpush1.msra.mxu0 0.0
  %1204 = vmatprep.subr.mxu0 0.0
  %1205 = vmatpush1.msra.mxu0 0.0
  %1206 = vmatprep.subr.mxu0 0.0
  %1207 = vmatpush1.msra.mxu0 0.0
  %1208 = vmatprep.subr.mxu0 0.0
  %1209 = vmatpush1.msra.mxu0 0.0
  %1210 = vmatprep.subr.mxu0 0.0
  %1211 = vmatpush1.msra.mxu0 0.0
  %1212 = vmatprep.subr.mxu0 0.0
  %1213 = vmatpush1.msra.mxu0 0.0
  %1214 = vmatprep.subr.mxu0 0.0
  %1215 = vmatpush1.msra.mxu0 0.0
  %1216 = vmatprep.mubr.f32.mxu0 0.0
  %v1217 = vand.u32 %v984, 4294901760
  %v1218 = vsub.f32 %v984, %v1217
  %1219 = vmatmul.mubr.f32.gmra.mrb[0].mxu0 %v1218
  %v1220 = vpop.f32.mrb[0].mxu0
  %v1221 = vadd.f32 %v1145, %v1220
  %v1222 = vpop.f32.mrb[0].mxu0
  %1223 = vdwg.mxu0
  %1224 = vmatprep.subr.mxu0 0.0
  %v1225 = vand.u32 %v980, 4294901760
  %1226 = vmatpush1.msra.mxu0 %v1225
  %1227 = vmatprep.subr.mxu0 0.0
  %v1228 = vand.u32 %v988, 4294901760
  %1229 = vmatpush1.msra.mxu0 %v1228
  %1230 = vmatprep.subr.mxu0 0.0
  %1231 = vmatpush1.msra.mxu0 0.0
  %1232 = vmatprep.subr.mxu0 0.0
  %1233 = vmatpush1.msra.mxu0 0.0
  %1234 = vmatprep.subr.mxu0 0.0
  %1235 = vmatpush1.msra.mxu0 0.0
  %1236 = vmatprep.subr.mxu0 0.0
  %1237 = vmatpush1.msra.mxu0 0.0
  %1238 = vmatprep.subr.mxu0 0.0
  %1239 = vmatpush1.msra.mxu0 0.0
  %1240 = vmatprep.subr.mxu0 0.0
  %1241 = vmatpush1.msra.mxu0 0.0
  %1242 = vmatprep.subr.mxu0 0.0
  %1243 = vmatpush1.msra.mxu0 0.0
  %1244 = vmatprep.subr.mxu0 0.0
  %1245 = vmatpush1.msra.mxu0 0.0
  %1246 = vmatprep.subr.mxu0 0.0
  %1247 = vmatpush1.msra.mxu0 0.0
  %1248 = vmatprep.subr.mxu0 0.0
  %1249 = vmatpush1.msra.mxu0 0.0
  %1250 = vmatprep.subr.mxu0 0.0
  %1251 = vmatpush1.msra.mxu0 0.0
  %1252 = vmatprep.subr.mxu0 0.0
  %1253 = vmatpush1.msra.mxu0 0.0
  %1254 = vmatprep.subr.mxu0 0.0
  %1255 = vmatpush1.msra.mxu0 0.0
  %1256 = vmatprep.subr.mxu0 0.0
  %1257 = vmatpush1.msra.mxu0 0.0
  %1258 = vmatprep.subr.mxu0 0.0
  %1259 = vmatpush1.msra.mxu0 0.0
  %1260 = vmatprep.subr.mxu0 0.0
  %1261 = vmatpush1.msra.mxu0 0.0
  %1262 = vmatprep.subr.mxu0 0.0
  %1263 = vmatpush1.msra.mxu0 0.0
  %1264 = vmatprep.subr.mxu0 0.0
  %1265 = vmatpush1.msra.mxu0 0.0
  %1266 = vmatprep.subr.mxu0 0.0
  %1267 = vmatpush1.msra.mxu0 0.0
  %1268 = vmatprep.subr.mxu0 0.0
  %1269 = vmatpush1.msra.mxu0 0.0
  %1270 = vmatprep.subr.mxu0 0.0
  %1271 = vmatpush1.msra.mxu0 0.0
  %1272 = vmatprep.subr.mxu0 0.0
  %1273 = vmatpush1.msra.mxu0 0.0
  %1274 = vmatprep.subr.mxu0 0.0
  %1275 = vmatpush1.msra.mxu0 0.0
  %1276 = vmatprep.subr.mxu0 0.0
  %1277 = vmatpush1.msra.mxu0 0.0
  %1278 = vmatprep.subr.mxu0 0.0
  %1279 = vmatpush1.msra.mxu0 0.0
  %1280 = vmatprep.subr.mxu0 0.0
  %1281 = vmatpush1.msra.mxu0 0.0
  %1282 = vmatprep.subr.mxu0 0.0
  %1283 = vmatpush1.msra.mxu0 0.0
  %1284 = vmatprep.subr.mxu0 0.0
  %1285 = vmatpush1.msra.mxu0 0.0
  %1286 = vmatprep.subr.mxu0 0.0
  %1287 = vmatpush1.msra.mxu0 0.0
  %1288 = vmatprep.subr.mxu0 0.0
  %1289 = vmatpush1.msra.mxu0 0.0
  %1290 = vmatprep.mubr.f32.mxu0 0.0
  %v1291 = vand.u32 %v984, 4294901760
  %v1292 = vsub.f32 %v984, %v1291
  %v1293 = vand.u32 %v1292, 4294901760
  %1294 = vmatmul.mubr.f32.gmra.mrb[0].mxu0 %v1293
  %v1295 = vpop.f32.mrb[0].mxu0
  %v1296 = vadd.f32 %v1221, %v1295
  %v1297 = vpop.f32.mrb[0].mxu0
  %1298 = vdwg.mxu0
  %1299 = vmatprep.subr.mxu0 0.0
  %v1300 = vand.u32 %v980, 4294901760
  %v1301 = vsub.f32 %v980, %v1300
  %v1302 = vand.u32 %v1301, 4294901760
  %1303 = vmatpush1.msra.mxu0 %v1302
  %1304 = vmatprep.subr.mxu0 0.0
  %v1305 = vand.u32 %v988, 4294901760
  %v1306 = vsub.f32 %v988, %v1305
  %v1307 = vand.u32 %v1306, 4294901760
  %1308 = vmatpush1.msra.mxu0 %v1307
  %1309 = vmatprep.subr.mxu0 0.0
  %1310 = vmatpush1.msra.mxu0 0.0
  %1311 = vmatprep.subr.mxu0 0.0
  %1312 = vmatpush1.msra.mxu0 0.0
  %1313 = vmatprep.subr.mxu0 0.0
  %1314 = vmatpush1.msra.mxu0 0.0
  %1315 = vmatprep.subr.mxu0 0.0
  %1316 = vmatpush1.msra.mxu0 0.0
  %1317 = vmatprep.subr.mxu0 0.0
  %1318 = vmatpush1.msra.mxu0 0.0
  %1319 = vmatprep.subr.mxu0 0.0
  %1320 = vmatpush1.msra.mxu0 0.0
  %1321 = vmatprep.subr.mxu0 0.0
  %1322 = vmatpush1.msra.mxu0 0.0
  %1323 = vmatprep.subr.mxu0 0.0
  %1324 = vmatpush1.msra.mxu0 0.0
  %1325 = vmatprep.subr.mxu0 0.0
  %1326 = vmatpush1.msra.mxu0 0.0
  %1327 = vmatprep.subr.mxu0 0.0
  %1328 = vmatpush1.msra.mxu0 0.0
  %1329 = vmatprep.subr.mxu0 0.0
  %1330 = vmatpush1.msra.mxu0 0.0
  %1331 = vmatprep.subr.mxu0 0.0
  %1332 = vmatpush1.msra.mxu0 0.0
  %1333 = vmatprep.subr.mxu0 0.0
  %1334 = vmatpush1.msra.mxu0 0.0
  %1335 = vmatprep.subr.mxu0 0.0
  %1336 = vmatpush1.msra.mxu0 0.0
  %1337 = vmatprep.subr.mxu0 0.0
  %1338 = vmatpush1.msra.mxu0 0.0
  %1339 = vmatprep.subr.mxu0 0.0
  %1340 = vmatpush1.msra.mxu0 0.0
  %1341 = vmatprep.subr.mxu0 0.0
  %1342 = vmatpush1.msra.mxu0 0.0
  %1343 = vmatprep.subr.mxu0 0.0
  %1344 = vmatpush1.msra.mxu0 0.0
  %1345 = vmatprep.subr.mxu0 0.0
  %1346 = vmatpush1.msra.mxu0 0.0
  %1347 = vmatprep.subr.mxu0 0.0
  %1348 = vmatpush1.msra.mxu0 0.0
  %1349 = vmatprep.subr.mxu0 0.0
  %1350 = vmatpush1.msra.mxu0 0.0
  %1351 = vmatprep.subr.mxu0 0.0
  %1352 = vmatpush1.msra.mxu0 0.0
  %1353 = vmatprep.subr.mxu0 0.0
  %1354 = vmatpush1.msra.mxu0 0.0
  %1355 = vmatprep.subr.mxu0 0.0
  %1356 = vmatpush1.msra.mxu0 0.0
  %1357 = vmatprep.subr.mxu0 0.0
  %1358 = vmatpush1.msra.mxu0 0.0
  %1359 = vmatprep.subr.mxu0 0.0
  %1360 = vmatpush1.msra.mxu0 0.0
  %1361 = vmatprep.subr.mxu0 0.0
  %1362 = vmatpush1.msra.mxu0 0.0
  %1363 = vmatprep.subr.mxu0 0.0
  %1364 = vmatpush1.msra.mxu0 0.0
  %1365 = vmatprep.subr.mxu0 0.0
  %1366 = vmatpush1.msra.mxu0 0.0
  %1367 = vmatprep.subr.mxu0 0.0
  %1368 = vmatpush1.msra.mxu0 0.0
  %1369 = vmatprep.mubr.f32.mxu0 0.0
  %v1370 = vand.u32 %v984, 4294901760
  %1371 = vmatmul.mubr.f32.gmra.mrb[0].mxu0 %v1370
  %v1372 = vpop.f32.mrb[0].mxu0
  %v1373 = vadd.f32 %v1296, %v1372
  %v1374 = vpop.f32.mrb[0].mxu0
  %1375 = vdwg.mxu0
  %1376 = vmatprep.subr.mxu0 0.0
  %v1377 = vand.u32 %v980, 4294901760
  %1378 = vmatpush1.msra.mxu0 %v1377
  %1379 = vmatprep.subr.mxu0 0.0
  %v1380 = vand.u32 %v988, 4294901760
  %1381 = vmatpush1.msra.mxu0 %v1380
  %1382 = vmatprep.subr.mxu0 0.0
  %1383 = vmatpush1.msra.mxu0 0.0
  %1384 = vmatprep.subr.mxu0 0.0
  %1385 = vmatpush1.msra.mxu0 0.0
  %1386 = vmatprep.subr.mxu0 0.0
  %1387 = vmatpush1.msra.mxu0 0.0
  %1388 = vmatprep.subr.mxu0 0.0
  %1389 = vmatpush1.msra.mxu0 0.0
  %1390 = vmatprep.subr.mxu0 0.0
  %1391 = vmatpush1.msra.mxu0 0.0
  %1392 = vmatprep.subr.mxu0 0.0
  %1393 = vmatpush1.msra.mxu0 0.0
  %1394 = vmatprep.subr.mxu0 0.0
  %1395 = vmatpush1.msra.mxu0 0.0
  %1396 = vmatprep.subr.mxu0 0.0
  %1397 = vmatpush1.msra.mxu0 0.0
  %1398 = vmatprep.subr.mxu0 0.0
  %1399 = vmatpush1.msra.mxu0 0.0
  %1400 = vmatprep.subr.mxu0 0.0
  %1401 = vmatpush1.msra.mxu0 0.0
  %1402 = vmatprep.subr.mxu0 0.0
  %1403 = vmatpush1.msra.mxu0 0.0
  %1404 = vmatprep.subr.mxu0 0.0
  %1405 = vmatpush1.msra.mxu0 0.0
  %1406 = vmatprep.subr.mxu0 0.0
  %1407 = vmatpush1.msra.mxu0 0.0
  %1408 = vmatprep.subr.mxu0 0.0
  %1409 = vmatpush1.msra.mxu0 0.0
  %1410 = vmatprep.subr.mxu0 0.0
  %1411 = vmatpush1.msra.mxu0 0.0
  %1412 = vmatprep.subr.mxu0 0.0
  %1413 = vmatpush1.msra.mxu0 0.0
  %1414 = vmatprep.subr.mxu0 0.0
  %1415 = vmatpush1.msra.mxu0 0.0
  %1416 = vmatprep.subr.mxu0 0.0
  %1417 = vmatpush1.msra.mxu0 0.0
  %1418 = vmatprep.subr.mxu0 0.0
  %1419 = vmatpush1.msra.mxu0 0.0
  %1420 = vmatprep.subr.mxu0 0.0
  %1421 = vmatpush1.msra.mxu0 0.0
  %1422 = vmatprep.subr.mxu0 0.0
  %1423 = vmatpush1.msra.mxu0 0.0
  %1424 = vmatprep.subr.mxu0 0.0
  %1425 = vmatpush1.msra.mxu0 0.0
  %1426 = vmatprep.subr.mxu0 0.0
  %1427 = vmatpush1.msra.mxu0 0.0
  %1428 = vmatprep.subr.mxu0 0.0
  %1429 = vmatpush1.msra.mxu0 0.0
  %1430 = vmatprep.subr.mxu0 0.0
  %1431 = vmatpush1.msra.mxu0 0.0
  %1432 = vmatprep.subr.mxu0 0.0
  %1433 = vmatpush1.msra.mxu0 0.0
  %1434 = vmatprep.subr.mxu0 0.0
  %1435 = vmatpush1.msra.mxu0 0.0
  %1436 = vmatprep.subr.mxu0 0.0
  %1437 = vmatpush1.msra.mxu0 0.0
  %1438 = vmatprep.subr.mxu0 0.0
  %1439 = vmatpush1.msra.mxu0 0.0
  %1440 = vmatprep.subr.mxu0 0.0
  %1441 = vmatpush1.msra.mxu0 0.0
  %1442 = vmatprep.mubr.f32.mxu0 0.0
  %v1443 = vand.u32 %v984, 4294901760
  %1444 = vmatmul.mubr.f32.gmra.mrb[0].mxu0 %v1443
  %v1445 = vpop.f32.mrb[0].mxu0
  %v1446 = vadd.f32 %v1373, %v1445
  %v1447 = vpop.f32.mrb[0].mxu0
  %1448 = vdwg.mxu0
  %v1449 = vadd.f32 %v979, %v1446
  %v1450 = vld [vmem:[%s7] sm:$0x1]
  %v1452 = vlaneseq
  %v1453 = vshrl.u32 %v1452, 7
  %v1454 = vsub.s32 0, %v1453
  %v1455 = vrot.slane %v1450, %v1454
  %v1457 = vadd.f32 %v1449, %v1455
  %v1458 = vmax.f32 %v1457, 0.0
  %v1459 = vld [vmem:[%s8] sm:$0xff]
  %v1460 = vld [vmem:[%s8 + $0x8] sm:$0xff]
  %v1461 = vld [vmem:[%s8 + $0x10] sm:$0xff]
  %v1462 = vld [vmem:[%s8 + $0x18] sm:$0xff]
  %v1463 = vld [vmem:[%s8 + $0x20] sm:$0xff]
  %v1464 = vld [vmem:[%s8 + $0x28] sm:$0xff]
  %v1465 = vld [vmem:[%s8 + $0x30] sm:$0xff]
  %v1466 = vld [vmem:[%s8 + $0x38] sm:$0xff]
  %v1467 = vld [vmem:[%s9] sm:$0x1]
  %v1469 = vlaneseq
  %v1470 = vshrl.u32 %v1469, 7
  %v1471 = vsub.s32 0, %v1470
  %v1472 = vrot.slane %v1467, %v1471
  %vm1474 = vcmask 523264
  %v1476 = vsel %vm1474, %v1458, 0
  %1478 = vmatprep.subr.mxu0 0.0
  %v1479 = vand.u32 %v1459, 4294901760
  %1480 = vmatpush1.msra.mxu0 %v1479
  %1481 = vmatprep.subr.mxu0 0.0
  %v1482 = vand.u32 %v1460, 4294901760
  %1483 = vmatpush1.msra.mxu0 %v1482
  %1484 = vmatprep.subr.mxu0 0.0
  %v1485 = vand.u32 %v1461, 4294901760
  %1486 = vmatpush1.msra.mxu0 %v1485
  %1487 = vmatprep.subr.mxu0 0.0
  %v1488 = vand.u32 %v1462, 4294901760
  %1489 = vmatpush1.msra.mxu0 %v1488
  %1490 = vmatprep.subr.mxu0 0.0
  %v1491 = vand.u32 %v1463, 4294901760
  %1492 = vmatpush1.msra.mxu0 %v1491
  %1493 = vmatprep.subr.mxu0 0.0
  %v1494 = vand.u32 %v1464, 4294901760
  %1495 = vmatpush1.msra.mxu0 %v1494
  %1496 = vmatprep.subr.mxu0 0.0
  %v1497 = vand.u32 %v1465, 4294901760
  %1498 = vmatpush1.msra.mxu0 %v1497
  %1499 = vmatprep.subr.mxu0 0.0
  %v1500 = vand.u32 %v1466, 4294901760
  %1501 = vmatpush1.msra.mxu0 %v1500
  %1502 = vmatprep.subr.mxu0 0.0
  %1503 = vmatpush1.msra.mxu0 0.0
  %1504 = vmatprep.subr.mxu0 0.0
  %1505 = vmatpush1.msra.mxu0 0.0
  %1506 = vmatprep.subr.mxu0 0.0
  %1507 = vmatpush1.msra.mxu0 0.0
  %1508 = vmatprep.subr.mxu0 0.0
  %1509 = vmatpush1.msra.mxu0 0.0
  %1510 = vmatprep.subr.mxu0 0.0
  %1511 = vmatpush1.msra.mxu0 0.0
  %1512 = vmatprep.subr.mxu0 0.0
  %1513 = vmatpush1.msra.mxu0 0.0
  %1514 = vmatprep.subr.mxu0 0.0
  %1515 = vmatpush1.msra.mxu0 0.0
  %1516 = vmatprep.subr.mxu0 0.0
  %1517 = vmatpush1.msra.mxu0 0.0
  %1518 = vmatprep.subr.mxu0 0.0
  %1519 = vmatpush1.msra.mxu0 0.0
  %1520 = vmatprep.subr.mxu0 0.0
  %1521 = vmatpush1.msra.mxu0 0.0
  %1522 = vmatprep.subr.mxu0 0.0
  %1523 = vmatpush1.msra.mxu0 0.0
  %1524 = vmatprep.subr.mxu0 0.0
  %1525 = vmatpush1.msra.mxu0 0.0
  %1526 = vmatprep.subr.mxu0 0.0
  %1527 = vmatpush1.msra.mxu0 0.0
  %1528 = vmatprep.subr.mxu0 0.0
  %1529 = vmatpush1.msra.mxu0 0.0
  %1530 = vmatprep.subr.mxu0 0.0
  %1531 = vmatpush1.msra.mxu0 0.0
  %1532 = vmatprep.subr.mxu0 0.0
  %1533 = vmatpush1.msra.mxu0 0.0
  %1534 = vmatprep.subr.mxu0 0.0
  %1535 = vmatpush1.msra.mxu0 0.0
  %1536 = vmatprep.subr.mxu0 0.0
  %1537 = vmatpush1.msra.mxu0 0.0
  %1538 = vmatprep.subr.mxu0 0.0
  %1539 = vmatpush1.msra.mxu0 0.0
  %1540 = vmatprep.subr.mxu0 0.0
  %1541 = vmatpush1.msra.mxu0 0.0
  %1542 = vmatprep.subr.mxu0 0.0
  %1543 = vmatpush1.msra.mxu0 0.0
  %1544 = vmatprep.subr.mxu0 0.0
  %1545 = vmatpush1.msra.mxu0 0.0
  %1546 = vmatprep.subr.mxu0 0.0
  %1547 = vmatpush1.msra.mxu0 0.0
  %1548 = vmatprep.subr.mxu0 0.0
  %1549 = vmatpush1.msra.mxu0 0.0
  %1550 = vmatprep.mubr.f32.mxu0 0.0
  %v1551 = vand.u32 %v1476, 4294901760
  %v1552 = vsub.f32 %v1476, %v1551
  %v1553 = vand.u32 %v1552, 4294901760
  %v1554 = vsub.f32 %v1552, %v1553
  %v1555 = vand.u32 %v1554, 4294901760
  %1556 = vmatmul.mubr.f32.gmra.mrb[0].mxu0 %v1555
  %v1557 = vpop.f32.mrb[0].mxu0
  %v1558 = vadd.f32 %v1472, %v1557
  %v1559 = vpop.f32.mrb[0].mxu0
  %1560 = vdwg.mxu0
  %1561 = vmatprep.subr.mxu0 0.0
  %v1562 = vand.u32 %v1459, 4294901760
  %v1563 = vsub.f32 %v1459, %v1562
  %v1564 = vand.u32 %v1563, 4294901760
  %v1565 = vsub.f32 %v1563, %v1564
  %v1566 = vand.u32 %v1565, 4294901760
  %1567 = vmatpush1.msra.mxu0 %v1566
  %1568 = vmatprep.subr.mxu0 0.0
  %v1569 = vand.u32 %v1460, 4294901760
  %v1570 = vsub.f32 %v1460, %v1569
  %v1571 = vand.u32 %v1570, 4294901760
  %v1572 = vsub.f32 %v1570, %v1571
  %v1573 = vand.u32 %v1572, 4294901760
  %1574 = vmatpush1.msra.mxu0 %v1573
  %1575 = vmatprep.subr.mxu0 0.0
  %v1576 = vand.u32 %v1461, 4294901760
  %v1577 = vsub.f32 %v1461, %v1576
  %v1578 = vand.u32 %v1577, 4294901760
  %v1579 = vsub.f32 %v1577, %v1578
  %v1580 = vand.u32 %v1579, 4294901760
  %1581 = vmatpush1.msra.mxu0 %v1580
  %1582 = vmatprep.subr.mxu0 0.0
  %v1583 = vand.u32 %v1462, 4294901760
  %v1584 = vsub.f32 %v1462, %v1583
  %v1585 = vand.u32 %v1584, 4294901760
  %v1586 = vsub.f32 %v1584, %v1585
  %v1587 = vand.u32 %v1586, 4294901760
  %1588 = vmatpush1.msra.mxu0 %v1587
  %1589 = vmatprep.subr.mxu0 0.0
  %v1590 = vand.u32 %v1463, 4294901760
  %v1591 = vsub.f32 %v1463, %v1590
  %v1592 = vand.u32 %v1591, 4294901760
  %v1593 = vsub.f32 %v1591, %v1592
  %v1594 = vand.u32 %v1593, 4294901760
  %1595 = vmatpush1.msra.mxu0 %v1594
  %1596 = vmatprep.subr.mxu0 0.0
  %v1597 = vand.u32 %v1464, 4294901760
  %v1598 = vsub.f32 %v1464, %v1597
  %v1599 = vand.u32 %v1598, 4294901760
  %v1600 = vsub.f32 %v1598, %v1599
  %v1601 = vand.u32 %v1600, 4294901760
  %1602 = vmatpush1.msra.mxu0 %v1601
  %1603 = vmatprep.subr.mxu0 0.0
  %v1604 = vand.u32 %v1465, 4294901760
  %v1605 = vsub.f32 %v1465, %v1604
  %v1606 = vand.u32 %v1605, 4294901760
  %v1607 = vsub.f32 %v1605, %v1606
  %v1608 = vand.u32 %v1607, 4294901760
  %1609 = vmatpush1.msra.mxu0 %v1608
  %1610 = vmatprep.subr.mxu0 0.0
  %v1611 = vand.u32 %v1466, 4294901760
  %v1612 = vsub.f32 %v1466, %v1611
  %v1613 = vand.u32 %v1612, 4294901760
  %v1614 = vsub.f32 %v1612, %v1613
  %v1615 = vand.u32 %v1614, 4294901760
  %1616 = vmatpush1.msra.mxu0 %v1615
  %1617 = vmatprep.subr.mxu0 0.0
  %1618 = vmatpush1.msra.mxu0 0.0
  %1619 = vmatprep.subr.mxu0 0.0
  %1620 = vmatpush1.msra.mxu0 0.0
  %1621 = vmatprep.subr.mxu0 0.0
  %1622 = vmatpush1.msra.mxu0 0.0
  %1623 = vmatprep.subr.mxu0 0.0
  %1624 = vmatpush1.msra.mxu0 0.0
  %1625 = vmatprep.subr.mxu0 0.0
  %1626 = vmatpush1.msra.mxu0 0.0
  %1627 = vmatprep.subr.mxu0 0.0
  %1628 = vmatpush1.msra.mxu0 0.0
  %1629 = vmatprep.subr.mxu0 0.0
  %1630 = vmatpush1.msra.mxu0 0.0
  %1631 = vmatprep.subr.mxu0 0.0
  %1632 = vmatpush1.msra.mxu0 0.0
  %1633 = vmatprep.subr.mxu0 0.0
  %1634 = vmatpush1.msra.mxu0 0.0
  %1635 = vmatprep.subr.mxu0 0.0
  %1636 = vmatpush1.msra.mxu0 0.0
  %1637 = vmatprep.subr.mxu0 0.0
  %1638 = vmatpush1.msra.mxu0 0.0
  %1639 = vmatprep.subr.mxu0 0.0
  %1640 = vmatpush1.msra.mxu0 0.0
  %1641 = vmatprep.subr.mxu0 0.0
  %1642 = vmatpush1.msra.mxu0 0.0
  %1643 = vmatprep.subr.mxu0 0.0
  %1644 = vmatpush1.msra.mxu0 0.0
  %1645 = vmatprep.subr.mxu0 0.0
  %1646 = vmatpush1.msra.mxu0 0.0
  %1647 = vmatprep.subr.mxu0 0.0
  %1648 = vmatpush1.msra.mxu0 0.0
  %1649 = vmatprep.subr.mxu0 0.0
  %1650 = vmatpush1.msra.mxu0 0.0
  %1651 = vmatprep.subr.mxu0 0.0
  %1652 = vmatpush1.msra.mxu0 0.0
  %1653 = vmatprep.subr.mxu0 0.0
  %1654 = vmatpush1.msra.mxu0 0.0
  %1655 = vmatprep.subr.mxu0 0.0
  %1656 = vmatpush1.msra.mxu0 0.0
  %1657 = vmatprep.subr.mxu0 0.0
  %1658 = vmatpush1.msra.mxu0 0.0
  %1659 = vmatprep.subr.mxu0 0.0
  %1660 = vmatpush1.msra.mxu0 0.0
  %1661 = vmatprep.subr.mxu0 0.0
  %1662 = vmatpush1.msra.mxu0 0.0
  %1663 = vmatprep.subr.mxu0 0.0
  %1664 = vmatpush1.msra.mxu0 0.0
  %1665 = vmatprep.mubr.f32.mxu0 0.0
  %v1666 = vand.u32 %v1476, 4294901760
  %1667 = vmatmul.mubr.f32.gmra.mrb[0].mxu0 %v1666
  %v1668 = vpop.f32.mrb[0].mxu0
  %v1669 = vadd.f32 %v1558, %v1668
  %v1670 = vpop.f32.mrb[0].mxu0
  %1671 = vdwg.mxu0
  %1672 = vmatprep.subr.mxu0 0.0
  %v1673 = vand.u32 %v1459, 4294901760
  %v1674 = vsub.f32 %v1459, %v1673
  %1675 = vmatpush1.msra.mxu0 %v1674
  %1676 = vmatprep.subr.mxu0 0.0
  %v1677 = vand.u32 %v1460, 4294901760
  %v1678 = vsub.f32 %v1460, %v1677
  %1679 = vmatpush1.msra.mxu0 %v1678
  %1680 = vmatprep.subr.mxu0 0.0
  %v1681 = vand.u32 %v1461, 4294901760
  %v1682 = vsub.f32 %v1461, %v1681
  %1683 = vmatpush1.msra.mxu0 %v1682
  %1684 = vmatprep.subr.mxu0 0.0
  %v1685 = vand.u32 %v1462, 4294901760
  %v1686 = vsub.f32 %v1462, %v1685
  %1687 = vmatpush1.msra.mxu0 %v1686
  %1688 = vmatprep.subr.mxu0 0.0
  %v1689 = vand.u32 %v1463, 4294901760
  %v1690 = vsub.f32 %v1463, %v1689
  %1691 = vmatpush1.msra.mxu0 %v1690
  %1692 = vmatprep.subr.mxu0 0.0
  %v1693 = vand.u32 %v1464, 4294901760
  %v1694 = vsub.f32 %v1464, %v1693
  %1695 = vmatpush1.msra.mxu0 %v1694
  %1696 = vmatprep.subr.mxu0 0.0
  %v1697 = vand.u32 %v1465, 4294901760
  %v1698 = vsub.f32 %v1465, %v1697
  %1699 = vmatpush1.msra.mxu0 %v1698
  %1700 = vmatprep.subr.mxu0 0.0
  %v1701 = vand.u32 %v1466, 4294901760
  %v1702 = vsub.f32 %v1466, %v1701
  %1703 = vmatpush1.msra.mxu0 %v1702
  %1704 = vmatprep.subr.mxu0 0.0
  %1705 = vmatpush1.msra.mxu0 0.0
  %1706 = vmatprep.subr.mxu0 0.0
  %1707 = vmatpush1.msra.mxu0 0.0
  %1708 = vmatprep.subr.mxu0 0.0
  %1709 = vmatpush1.msra.mxu0 0.0
  %1710 = vmatprep.subr.mxu0 0.0
  %1711 = vmatpush1.msra.mxu0 0.0
  %1712 = vmatprep.subr.mxu0 0.0
  %1713 = vmatpush1.msra.mxu0 0.0
  %1714 = vmatprep.subr.mxu0 0.0
  %1715 = vmatpush1.msra.mxu0 0.0
  %1716 = vmatprep.subr.mxu0 0.0
  %1717 = vmatpush1.msra.mxu0 0.0
  %1718 = vmatprep.subr.mxu0 0.0
  %1719 = vmatpush1.msra.mxu0 0.0
  %1720 = vmatprep.subr.mxu0 0.0
  %1721 = vmatpush1.msra.mxu0 0.0
  %1722 = vmatprep.subr.mxu0 0.0
  %1723 = vmatpush1.msra.mxu0 0.0
  %1724 = vmatprep.subr.mxu0 0.0
  %1725 = vmatpush1.msra.mxu0 0.0
  %1726 = vmatprep.subr.mxu0 0.0
  %1727 = vmatpush1.msra.mxu0 0.0
  %1728 = vmatprep.subr.mxu0 0.0
  %1729 = vmatpush1.msra.mxu0 0.0
  %1730 = vmatprep.subr.mxu0 0.0
  %1731 = vmatpush1.msra.mxu0 0.0
  %1732 = vmatprep.subr.mxu0 0.0
  %1733 = vmatpush1.msra.mxu0 0.0
  %1734 = vmatprep.subr.mxu0 0.0
  %1735 = vmatpush1.msra.mxu0 0.0
  %1736 = vmatprep.subr.mxu0 0.0
  %1737 = vmatpush1.msra.mxu0 0.0
  %1738 = vmatprep.subr.mxu0 0.0
  %1739 = vmatpush1.msra.mxu0 0.0
  %1740 = vmatprep.subr.mxu0 0.0
  %1741 = vmatpush1.msra.mxu0 0.0
  %1742 = vmatprep.subr.mxu0 0.0
  %1743 = vmatpush1.msra.mxu0 0.0
  %1744 = vmatprep.subr.mxu0 0.0
  %1745 = vmatpush1.msra.mxu0 0.0
  %1746 = vmatprep.subr.mxu0 0.0
  %1747 = vmatpush1.msra.mxu0 0.0
  %1748 = vmatprep.subr.mxu0 0.0
  %1749 = vmatpush1.msra.mxu0 0.0
  %1750 = vmatprep.subr.mxu0 0.0
  %1751 = vmatpush1.msra.mxu0 0.0
  %1752 = vmatprep.mubr.f32.mxu0 0.0
  %v1753 = vand.u32 %v1476, 4294901760
  %v1754 = vsub.f32 %v1476, %v1753
  %1755 = vmatmul.mubr.f32.gmra.mrb[0].mxu0 %v1754
  %v1756 = vpop.f32.mrb[0].mxu0
  %v1757 = vadd.f32 %v1669, %v1756
  %v1758 = vpop.f32.mrb[0].mxu0
  %1759 = vdwg.mxu0
  %1760 = vmatprep.subr.mxu0 0.0
  %v1761 = vand.u32 %v1459, 4294901760
  %1762 = vmatpush1.msra.mxu0 %v1761
  %1763 = vmatprep.subr.mxu0 0.0
  %v1764 = vand.u32 %v1460, 4294901760
  %1765 = vmatpush1.msra.mxu0 %v1764
  %1766 = vmatprep.subr.mxu0 0.0
  %v1767 = vand.u32 %v1461, 4294901760
  %1768 = vmatpush1.msra.mxu0 %v1767
  %1769 = vmatprep.subr.mxu0 0.0
  %v1770 = vand.u32 %v1462, 4294901760
  %1771 = vmatpush1.msra.mxu0 %v1770
  %1772 = vmatprep.subr.mxu0 0.0
  %v1773 = vand.u32 %v1463, 4294901760
  %1774 = vmatpush1.msra.mxu0 %v1773
  %1775 = vmatprep.subr.mxu0 0.0
  %v1776 = vand.u32 %v1464, 4294901760
  %1777 = vmatpush1.msra.mxu0 %v1776
  %1778 = vmatprep.subr.mxu0 0.0
  %v1779 = vand.u32 %v1465, 4294901760
  %1780 = vmatpush1.msra.mxu0 %v1779
  %1781 = vmatprep.subr.mxu0 0.0
  %v1782 = vand.u32 %v1466, 4294901760
  %1783 = vmatpush1.msra.mxu0 %v1782
  %1784 = vmatprep.subr.mxu0 0.0
  %1785 = vmatpush1.msra.mxu0 0.0
  %1786 = vmatprep.subr.mxu0 0.0
  %1787 = vmatpush1.msra.mxu0 0.0
  %1788 = vmatprep.subr.mxu0 0.0
  %1789 = vmatpush1.msra.mxu0 0.0
  %1790 = vmatprep.subr.mxu0 0.0
  %1791 = vmatpush1.msra.mxu0 0.0
  %1792 = vmatprep.subr.mxu0 0.0
  %1793 = vmatpush1.msra.mxu0 0.0
  %1794 = vmatprep.subr.mxu0 0.0
  %1795 = vmatpush1.msra.mxu0 0.0
  %1796 = vmatprep.subr.mxu0 0.0
  %1797 = vmatpush1.msra.mxu0 0.0
  %1798 = vmatprep.subr.mxu0 0.0
  %1799 = vmatpush1.msra.mxu0 0.0
  %1800 = vmatprep.subr.mxu0 0.0
  %1801 = vmatpush1.msra.mxu0 0.0
  %1802 = vmatprep.subr.mxu0 0.0
  %1803 = vmatpush1.msra.mxu0 0.0
  %1804 = vmatprep.subr.mxu0 0.0
  %1805 = vmatpush1.msra.mxu0 0.0
  %1806 = vmatprep.subr.mxu0 0.0
  %1807 = vmatpush1.msra.mxu0 0.0
  %1808 = vmatprep.subr.mxu0 0.0
  %1809 = vmatpush1.msra.mxu0 0.0
  %1810 = vmatprep.subr.mxu0 0.0
  %1811 = vmatpush1.msra.mxu0 0.0
  %1812 = vmatprep.subr.mxu0 0.0
  %1813 = vmatpush1.msra.mxu0 0.0
  %1814 = vmatprep.subr.mxu0 0.0
  %1815 = vmatpush1.msra.mxu0 0.0
  %1816 = vmatprep.subr.mxu0 0.0
  %1817 = vmatpush1.msra.mxu0 0.0
  %1818 = vmatprep.subr.mxu0 0.0
  %1819 = vmatpush1.msra.mxu0 0.0
  %1820 = vmatprep.subr.mxu0 0.0
  %1821 = vmatpush1.msra.mxu0 0.0
  %1822 = vmatprep.subr.mxu0 0.0
  %1823 = vmatpush1.msra.mxu0 0.0
  %1824 = vmatprep.subr.mxu0 0.0
  %1825 = vmatpush1.msra.mxu0 0.0
  %1826 = vmatprep.subr.mxu0 0.0
  %1827 = vmatpush1.msra.mxu0 0.0
  %1828 = vmatprep.subr.mxu0 0.0
  %1829 = vmatpush1.msra.mxu0 0.0
  %1830 = vmatprep.subr.mxu0 0.0
  %1831 = vmatpush1.msra.mxu0 0.0
  %1832 = vmatprep.mubr.f32.mxu0 0.0
  %v1833 = vand.u32 %v1476, 4294901760
  %v1834 = vsub.f32 %v1476, %v1833
  %v1835 = vand.u32 %v1834, 4294901760
  %1836 = vmatmul.mubr.f32.gmra.mrb[0].mxu0 %v1835
  %v1837 = vpop.f32.mrb[0].mxu0
  %v1838 = vadd.f32 %v1757, %v1837
  %v1839 = vpop.f32.mrb[0].mxu0
  %1840 = vdwg.mxu0
  %1841 = vmatprep.subr.mxu0 0.0
  %v1842 = vand.u32 %v1459, 4294901760
  %v1843 = vsub.f32 %v1459, %v1842
  %v1844 = vand.u32 %v1843, 4294901760
  %1845 = vmatpush1.msra.mxu0 %v1844
  %1846 = vmatprep.subr.mxu0 0.0
  %v1847 = vand.u32 %v1460, 4294901760
  %v1848 = vsub.f32 %v1460, %v1847
  %v1849 = vand.u32 %v1848, 4294901760
  %1850 = vmatpush1.msra.mxu0 %v1849
  %1851 = vmatprep.subr.mxu0 0.0
  %v1852 = vand.u32 %v1461, 4294901760
  %v1853 = vsub.f32 %v1461, %v1852
  %v1854 = vand.u32 %v1853, 4294901760
  %1855 = vmatpush1.msra.mxu0 %v1854
  %1856 = vmatprep.subr.mxu0 0.0
  %v1857 = vand.u32 %v1462, 4294901760
  %v1858 = vsub.f32 %v1462, %v1857
  %v1859 = vand.u32 %v1858, 4294901760
  %1860 = vmatpush1.msra.mxu0 %v1859
  %1861 = vmatprep.subr.mxu0 0.0
  %v1862 = vand.u32 %v1463, 4294901760
  %v1863 = vsub.f32 %v1463, %v1862
  %v1864 = vand.u32 %v1863, 4294901760
  %1865 = vmatpush1.msra.mxu0 %v1864
  %1866 = vmatprep.subr.mxu0 0.0
  %v1867 = vand.u32 %v1464, 4294901760
  %v1868 = vsub.f32 %v1464, %v1867
  %v1869 = vand.u32 %v1868, 4294901760
  %1870 = vmatpush1.msra.mxu0 %v1869
  %1871 = vmatprep.subr.mxu0 0.0
  %v1872 = vand.u32 %v1465, 4294901760
  %v1873 = vsub.f32 %v1465, %v1872
  %v1874 = vand.u32 %v1873, 4294901760
  %1875 = vmatpush1.msra.mxu0 %v1874
  %1876 = vmatprep.subr.mxu0 0.0
  %v1877 = vand.u32 %v1466, 4294901760
  %v1878 = vsub.f32 %v1466, %v1877
  %v1879 = vand.u32 %v1878, 4294901760
  %1880 = vmatpush1.msra.mxu0 %v1879
  %1881 = vmatprep.subr.mxu0 0.0
  %1882 = vmatpush1.msra.mxu0 0.0
  %1883 = vmatprep.subr.mxu0 0.0
  %1884 = vmatpush1.msra.mxu0 0.0
  %1885 = vmatprep.subr.mxu0 0.0
  %1886 = vmatpush1.msra.mxu0 0.0
  %1887 = vmatprep.subr.mxu0 0.0
  %1888 = vmatpush1.msra.mxu0 0.0
  %1889 = vmatprep.subr.mxu0 0.0
  %1890 = vmatpush1.msra.mxu0 0.0
  %1891 = vmatprep.subr.mxu0 0.0
  %1892 = vmatpush1.msra.mxu0 0.0
  %1893 = vmatprep.subr.mxu0 0.0
  %1894 = vmatpush1.msra.mxu0 0.0
  %1895 = vmatprep.subr.mxu0 0.0
  %1896 = vmatpush1.msra.mxu0 0.0
  %1897 = vmatprep.subr.mxu0 0.0
  %1898 = vmatpush1.msra.mxu0 0.0
  %1899 = vmatprep.subr.mxu0 0.0
  %1900 = vmatpush1.msra.mxu0 0.0
  %1901 = vmatprep.subr.mxu0 0.0
  %1902 = vmatpush1.msra.mxu0 0.0
  %1903 = vmatprep.subr.mxu0 0.0
  %1904 = vmatpush1.msra.mxu0 0.0
  %1905 = vmatprep.subr.mxu0 0.0
  %1906 = vmatpush1.msra.mxu0 0.0
  %1907 = vmatprep.subr.mxu0 0.0
  %1908 = vmatpush1.msra.mxu0 0.0
  %1909 = vmatprep.subr.mxu0 0.0
  %1910 = vmatpush1.msra.mxu0 0.0
  %1911 = vmatprep.subr.mxu0 0.0
  %1912 = vmatpush1.msra.mxu0 0.0
  %1913 = vmatprep.subr.mxu0 0.0
  %1914 = vmatpush1.msra.mxu0 0.0
  %1915 = vmatprep.subr.mxu0 0.0
  %1916 = vmatpush1.msra.mxu0 0.0
  %1917 = vmatprep.subr.mxu0 0.0
  %1918 = vmatpush1.msra.mxu0 0.0
  %1919 = vmatprep.subr.mxu0 0.0
  %1920 = vmatpush1.msra.mxu0 0.0
  %1921 = vmatprep.subr.mxu0 0.0
  %1922 = vmatpush1.msra.mxu0 0.0
  %1923 = vmatprep.subr.mxu0 0.0
  %1924 = vmatpush1.msra.mxu0 0.0
  %1925 = vmatprep.subr.mxu0 0.0
  %1926 = vmatpush1.msra.mxu0 0.0
  %1927 = vmatprep.subr.mxu0 0.0
  %1928 = vmatpush1.msra.mxu0 0.0
  %1929 = vmatprep.mubr.f32.mxu0 0.0
  %v1930 = vand.u32 %v1476, 4294901760
  %1931 = vmatmul.mubr.f32.gmra.mrb[0].mxu0 %v1930
  %v1932 = vpop.f32.mrb[0].mxu0
  %v1933 = vadd.f32 %v1838, %v1932
  %v1934 = vpop.f32.mrb[0].mxu0
  %1935 = vdwg.mxu0
  %1936 = vmatprep.subr.mxu0 0.0
  %v1937 = vand.u32 %v1459, 4294901760
  %1938 = vmatpush1.msra.mxu0 %v1937
  %1939 = vmatprep.subr.mxu0 0.0
  %v1940 = vand.u32 %v1460, 4294901760
  %1941 = vmatpush1.msra.mxu0 %v1940
  %1942 = vmatprep.subr.mxu0 0.0
  %v1943 = vand.u32 %v1461, 4294901760
  %1944 = vmatpush1.msra.mxu0 %v1943
  %1945 = vmatprep.subr.mxu0 0.0
  %v1946 = vand.u32 %v1462, 4294901760
  %1947 = vmatpush1.msra.mxu0 %v1946
  %1948 = vmatprep.subr.mxu0 0.0
  %v1949 = vand.u32 %v1463, 4294901760
  %1950 = vmatpush1.msra.mxu0 %v1949
  %1951 = vmatprep.subr.mxu0 0.0
  %v1952 = vand.u32 %v1464, 4294901760
  %1953 = vmatpush1.msra.mxu0 %v1952
  %1954 = vmatprep.subr.mxu0 0.0
  %v1955 = vand.u32 %v1465, 4294901760
  %1956 = vmatpush1.msra.mxu0 %v1955
  %1957 = vmatprep.subr.mxu0 0.0
  %v1958 = vand.u32 %v1466, 4294901760
  %1959 = vmatpush1.msra.mxu0 %v1958
  %1960 = vmatprep.subr.mxu0 0.0
  %1961 = vmatpush1.msra.mxu0 0.0
  %1962 = vmatprep.subr.mxu0 0.0
  %1963 = vmatpush1.msra.mxu0 0.0
  %1964 = vmatprep.subr.mxu0 0.0
  %1965 = vmatpush1.msra.mxu0 0.0
  %1966 = vmatprep.subr.mxu0 0.0
  %1967 = vmatpush1.msra.mxu0 0.0
  %1968 = vmatprep.subr.mxu0 0.0
  %1969 = vmatpush1.msra.mxu0 0.0
  %1970 = vmatprep.subr.mxu0 0.0
  %1971 = vmatpush1.msra.mxu0 0.0
  %1972 = vmatprep.subr.mxu0 0.0
  %1973 = vmatpush1.msra.mxu0 0.0
  %1974 = vmatprep.subr.mxu0 0.0
  %1975 = vmatpush1.msra.mxu0 0.0
  %1976 = vmatprep.subr.mxu0 0.0
  %1977 = vmatpush1.msra.mxu0 0.0
  %1978 = vmatprep.subr.mxu0 0.0
  %1979 = vmatpush1.msra.mxu0 0.0
  %1980 = vmatprep.subr.mxu0 0.0
  %1981 = vmatpush1.msra.mxu0 0.0
  %1982 = vmatprep.subr.mxu0 0.0
  %1983 = vmatpush1.msra.mxu0 0.0
  %1984 = vmatprep.subr.mxu0 0.0
  %1985 = vmatpush1.msra.mxu0 0.0
  %1986 = vmatprep.subr.mxu0 0.0
  %1987 = vmatpush1.msra.mxu0 0.0
  %1988 = vmatprep.subr.mxu0 0.0
  %1989 = vmatpush1.msra.mxu0 0.0
  %1990 = vmatprep.subr.mxu0 0.0
  %1991 = vmatpush1.msra.mxu0 0.0
  %1992 = vmatprep.subr.mxu0 0.0
  %1993 = vmatpush1.msra.mxu0 0.0
  %1994 = vmatprep.subr.mxu0 0.0
  %1995 = vmatpush1.msra.mxu0 0.0
  %1996 = vmatprep.subr.mxu0 0.0
  %1997 = vmatpush1.msra.mxu0 0.0
  %1998 = vmatprep.subr.mxu0 0.0
  %1999 = vmatpush1.msra.mxu0 0.0
  %2000 = vmatprep.subr.mxu0 0.0
  %2001 = vmatpush1.msra.mxu0 0.0
  %2002 = vmatprep.subr.mxu0 0.0
  %2003 = vmatpush1.msra.mxu0 0.0
  %2004 = vmatprep.subr.mxu0 0.0
  %2005 = vmatpush1.msra.mxu0 0.0
  %2006 = vmatprep.subr.mxu0 0.0
  %2007 = vmatpush1.msra.mxu0 0.0
  %2008 = vmatprep.mubr.f32.mxu0 0.0
  %v2009 = vand.u32 %v1476, 4294901760
  %2010 = vmatmul.mubr.f32.gmra.mrb[0].mxu0 %v2009
  %v2011 = vpop.f32.mrb[0].mxu0
  %v2012 = vadd.f32 %v1933, %v2011
  %v2013 = vpop.f32.mrb[0].mxu0
  %2014 = vdwg.mxu0
  %v2015 = vmax.f32 %v2012, 0.0
  %v2016 = vld [vmem:[%s10] sm:$0xff]
  %v2017 = vld [vmem:[%s10 + $0x8] sm:$0xff]
  %v2018 = vld [vmem:[%s10 + $0x10] sm:$0xff]
  %v2019 = vld [vmem:[%s10 + $0x18] sm:$0xff]
  %v2020 = vld [vmem:[%s11] sm:$0x1]
  %v2022 = vlaneseq
  %v2023 = vshrl.u32 %v2022, 7
  %v2024 = vsub.s32 0, %v2023
  %v2025 = vrot.slane %v2020, %v2024
  %vm2027 = vcmask 261120
  %v2029 = vsel %vm2027, %v2015, 0
  %2031 = vmatprep.subr.mxu0 0.0
  %v2032 = vand.u32 %v2016, 4294901760
  %2033 = vmatpush1.msra.mxu0 %v2032
  %2034 = vmatprep.subr.mxu0 0.0
  %v2035 = vand.u32 %v2017, 4294901760
  %2036 = vmatpush1.msra.mxu0 %v2035
  %2037 = vmatprep.subr.mxu0 0.0
  %v2038 = vand.u32 %v2018, 4294901760
  %2039 = vmatpush1.msra.mxu0 %v2038
  %2040 = vmatprep.subr.mxu0 0.0
  %v2041 = vand.u32 %v2019, 4294901760
  %2042 = vmatpush1.msra.mxu0 %v2041
  %2043 = vmatprep.subr.mxu0 0.0
  %2044 = vmatpush1.msra.mxu0 0.0
  %2045 = vmatprep.subr.mxu0 0.0
  %2046 = vmatpush1.msra.mxu0 0.0
  %2047 = vmatprep.subr.mxu0 0.0
  %2048 = vmatpush1.msra.mxu0 0.0
  %2049 = vmatprep.subr.mxu0 0.0
  %2050 = vmatpush1.msra.mxu0 0.0
  %2051 = vmatprep.subr.mxu0 0.0
  %2052 = vmatpush1.msra.mxu0 0.0
  %2053 = vmatprep.subr.mxu0 0.0
  %2054 = vmatpush1.msra.mxu0 0.0
  %2055 = vmatprep.subr.mxu0 0.0
  %2056 = vmatpush1.msra.mxu0 0.0
  %2057 = vmatprep.subr.mxu0 0.0
  %2058 = vmatpush1.msra.mxu0 0.0
  %2059 = vmatprep.subr.mxu0 0.0
  %2060 = vmatpush1.msra.mxu0 0.0
  %2061 = vmatprep.subr.mxu0 0.0
  %2062 = vmatpush1.msra.mxu0 0.0
  %2063 = vmatprep.subr.mxu0 0.0
  %2064 = vmatpush1.msra.mxu0 0.0
  %2065 = vmatprep.subr.mxu0 0.0
  %2066 = vmatpush1.msra.mxu0 0.0
  %2067 = vmatprep.subr.mxu0 0.0
  %2068 = vmatpush1.msra.mxu0 0.0
  %2069 = vmatprep.subr.mxu0 0.0
  %2070 = vmatpush1.msra.mxu0 0.0
  %2071 = vmatprep.subr.mxu0 0.0
  %2072 = vmatpush1.msra.mxu0 0.0
  %2073 = vmatprep.subr.mxu0 0.0
  %2074 = vmatpush1.msra.mxu0 0.0
  %2075 = vmatprep.subr.mxu0 0.0
  %2076 = vmatpush1.msra.mxu0 0.0
  %2077 = vmatprep.subr.mxu0 0.0
  %2078 = vmatpush1.msra.mxu0 0.0
  %2079 = vmatprep.subr.mxu0 0.0
  %2080 = vmatpush1.msra.mxu0 0.0
  %2081 = vmatprep.subr.mxu0 0.0
  %2082 = vmatpush1.msra.mxu0 0.0
  %2083 = vmatprep.subr.mxu0 0.0
  %2084 = vmatpush1.msra.mxu0 0.0
  %2085 = vmatprep.subr.mxu0 0.0
  %2086 = vmatpush1.msra.mxu0 0.0
  %2087 = vmatprep.subr.mxu0 0.0
  %2088 = vmatpush1.msra.mxu0 0.0
  %2089 = vmatprep.subr.mxu0 0.0
  %2090 = vmatpush1.msra.mxu0 0.0
  %2091 = vmatprep.subr.mxu0 0.0
  %2092 = vmatpush1.msra.mxu0 0.0
  %2093 = vmatprep.subr.mxu0 0.0
  %2094 = vmatpush1.msra.mxu0 0.0
  %2095 = vmatprep.subr.mxu0 0.0
  %2096 = vmatpush1.msra.mxu0 0.0
  %2097 = vmatprep.subr.mxu0 0.0
  %2098 = vmatpush1.msra.mxu0 0.0
  %2099 = vmatprep.mubr.f32.mxu0 0.0
  %v2100 = vand.u32 %v2029, 4294901760
  %v2101 = vsub.f32 %v2029, %v2100
  %v2102 = vand.u32 %v2101, 4294901760
  %v2103 = vsub.f32 %v2101, %v2102
  %v2104 = vand.u32 %v2103, 4294901760
  %2105 = vmatmul.mubr.f32.gmra.mrb[0].mxu0 %v2104
  %v2106 = vpop.f32.mrb[0].mxu0
  %v2107 = vadd.f32 %v2025, %v2106
  %v2108 = vpop.f32.mrb[0].mxu0
  %2109 = vdwg.mxu0
  %2110 = vmatprep.subr.mxu0 0.0
  %v2111 = vand.u32 %v2016, 4294901760
  %v2112 = vsub.f32 %v2016, %v2111
  %v2113 = vand.u32 %v2112, 4294901760
  %v2114 = vsub.f32 %v2112, %v2113
  %v2115 = vand.u32 %v2114, 4294901760
  %2116 = vmatpush1.msra.mxu0 %v2115
  %2117 = vmatprep.subr.mxu0 0.0
  %v2118 = vand.u32 %v2017, 4294901760
  %v2119 = vsub.f32 %v2017, %v2118
  %v2120 = vand.u32 %v2119, 4294901760
  %v2121 = vsub.f32 %v2119, %v2120
  %v2122 = vand.u32 %v2121, 4294901760
  %2123 = vmatpush1.msra.mxu0 %v2122
  %2124 = vmatprep.subr.mxu0 0.0
  %v2125 = vand.u32 %v2018, 4294901760
  %v2126 = vsub.f32 %v2018, %v2125
  %v2127 = vand.u32 %v2126, 4294901760
  %v2128 = vsub.f32 %v2126, %v2127
  %v2129 = vand.u32 %v2128, 4294901760
  %2130 = vmatpush1.msra.mxu0 %v2129
  %2131 = vmatprep.subr.mxu0 0.0
  %v2132 = vand.u32 %v2019, 4294901760
  %v2133 = vsub.f32 %v2019, %v2132
  %v2134 = vand.u32 %v2133, 4294901760
  %v2135 = vsub.f32 %v2133, %v2134
  %v2136 = vand.u32 %v2135, 4294901760
  %2137 = vmatpush1.msra.mxu0 %v2136
  %2138 = vmatprep.subr.mxu0 0.0
  %2139 = vmatpush1.msra.mxu0 0.0
  %2140 = vmatprep.subr.mxu0 0.0
  %2141 = vmatpush1.msra.mxu0 0.0
  %2142 = vmatprep.subr.mxu0 0.0
  %2143 = vmatpush1.msra.mxu0 0.0
  %2144 = vmatprep.subr.mxu0 0.0
  %2145 = vmatpush1.msra.mxu0 0.0
  %2146 = vmatprep.subr.mxu0 0.0
  %2147 = vmatpush1.msra.mxu0 0.0
  %2148 = vmatprep.subr.mxu0 0.0
  %2149 = vmatpush1.msra.mxu0 0.0
  %2150 = vmatprep.subr.mxu0 0.0
  %2151 = vmatpush1.msra.mxu0 0.0
  %2152 = vmatprep.subr.mxu0 0.0
  %2153 = vmatpush1.msra.mxu0 0.0
  %2154 = vmatprep.subr.mxu0 0.0
  %2155 = vmatpush1.msra.mxu0 0.0
  %2156 = vmatprep.subr.mxu0 0.0
  %2157 = vmatpush1.msra.mxu0 0.0
  %2158 = vmatprep.subr.mxu0 0.0
  %2159 = vmatpush1.msra.mxu0 0.0
  %2160 = vmatprep.subr.mxu0 0.0
  %2161 = vmatpush1.msra.mxu0 0.0
  %2162 = vmatprep.subr.mxu0 0.0
  %2163 = vmatpush1.msra.mxu0 0.0
  %2164 = vmatprep.subr.mxu0 0.0
  %2165 = vmatpush1.msra.mxu0 0.0
  %2166 = vmatprep.subr.mxu0 0.0
  %2167 = vmatpush1.msra.mxu0 0.0
  %2168 = vmatprep.subr.mxu0 0.0
  %2169 = vmatpush1.msra.mxu0 0.0
  %2170 = vmatprep.subr.mxu0 0.0
  %2171 = vmatpush1.msra.mxu0 0.0
  %2172 = vmatprep.subr.mxu0 0.0
  %2173 = vmatpush1.msra.mxu0 0.0
  %2174 = vmatprep.subr.mxu0 0.0
  %2175 = vmatpush1.msra.mxu0 0.0
  %2176 = vmatprep.subr.mxu0 0.0
  %2177 = vmatpush1.msra.mxu0 0.0
  %2178 = vmatprep.subr.mxu0 0.0
  %2179 = vmatpush1.msra.mxu0 0.0
  %2180 = vmatprep.subr.mxu0 0.0
  %2181 = vmatpush1.msra.mxu0 0.0
  %2182 = vmatprep.subr.mxu0 0.0
  %2183 = vmatpush1.msra.mxu0 0.0
  %2184 = vmatprep.subr.mxu0 0.0
  %2185 = vmatpush1.msra.mxu0 0.0
  %2186 = vmatprep.subr.mxu0 0.0
  %2187 = vmatpush1.msra.mxu0 0.0
  %2188 = vmatprep.subr.mxu0 0.0
  %2189 = vmatpush1.msra.mxu0 0.0
  %2190 = vmatprep.subr.mxu0 0.0
  %2191 = vmatpush1.msra.mxu0 0.0
  %2192 = vmatprep.subr.mxu0 0.0
  %2193 = vmatpush1.msra.mxu0 0.0
  %2194 = vmatprep.mubr.f32.mxu0 0.0
  %v2195 = vand.u32 %v2029, 4294901760
  %2196 = vmatmul.mubr.f32.gmra.mrb[0].mxu0 %v2195
  %v2197 = vpop.f32.mrb[0].mxu0
  %v2198 = vadd.f32 %v2107, %v2197
  %v2199 = vpop.f32.mrb[0].mxu0
  %2200 = vdwg.mxu0
  %2201 = vmatprep.subr.mxu0 0.0
  %v2202 = vand.u32 %v2016, 4294901760
  %v2203 = vsub.f32 %v2016, %v2202
  %2204 = vmatpush1.msra.mxu0 %v2203
  %2205 = vmatprep.subr.mxu0 0.0
  %v2206 = vand.u32 %v2017, 4294901760
  %v2207 = vsub.f32 %v2017, %v2206
  %2208 = vmatpush1.msra.mxu0 %v2207
  %2209 = vmatprep.subr.mxu0 0.0
  %v2210 = vand.u32 %v2018, 4294901760
  %v2211 = vsub.f32 %v2018, %v2210
  %2212 = vmatpush1.msra.mxu0 %v2211
  %2213 = vmatprep.subr.mxu0 0.0
  %v2214 = vand.u32 %v2019, 4294901760
  %v2215 = vsub.f32 %v2019, %v2214
  %2216 = vmatpush1.msra.mxu0 %v2215
  %2217 = vmatprep.subr.mxu0 0.0
  %2218 = vmatpush1.msra.mxu0 0.0
  %2219 = vmatprep.subr.mxu0 0.0
  %2220 = vmatpush1.msra.mxu0 0.0
  %2221 = vmatprep.subr.mxu0 0.0
  %2222 = vmatpush1.msra.mxu0 0.0
  %2223 = vmatprep.subr.mxu0 0.0
  %2224 = vmatpush1.msra.mxu0 0.0
  %2225 = vmatprep.subr.mxu0 0.0
  %2226 = vmatpush1.msra.mxu0 0.0
  %2227 = vmatprep.subr.mxu0 0.0
  %2228 = vmatpush1.msra.mxu0 0.0
  %2229 = vmatprep.subr.mxu0 0.0
  %2230 = vmatpush1.msra.mxu0 0.0
  %2231 = vmatprep.subr.mxu0 0.0
  %2232 = vmatpush1.msra.mxu0 0.0
  %2233 = vmatprep.subr.mxu0 0.0
  %2234 = vmatpush1.msra.mxu0 0.0
  %2235 = vmatprep.subr.mxu0 0.0
  %2236 = vmatpush1.msra.mxu0 0.0
  %2237 = vmatprep.subr.mxu0 0.0
  %2238 = vmatpush1.msra.mxu0 0.0
  %2239 = vmatprep.subr.mxu0 0.0
  %2240 = vmatpush1.msra.mxu0 0.0
  %2241 = vmatprep.subr.mxu0 0.0
  %2242 = vmatpush1.msra.mxu0 0.0
  %2243 = vmatprep.subr.mxu0 0.0
  %2244 = vmatpush1.msra.mxu0 0.0
  %2245 = vmatprep.subr.mxu0 0.0
  %2246 = vmatpush1.msra.mxu0 0.0
  %2247 = vmatprep.subr.mxu0 0.0
  %2248 = vmatpush1.msra.mxu0 0.0
  %2249 = vmatprep.subr.mxu0 0.0
  %2250 = vmatpush1.msra.mxu0 0.0
  %2251 = vmatprep.subr.mxu0 0.0
  %2252 = vmatpush1.msra.mxu0 0.0
  %2253 = vmatprep.subr.mxu0 0.0
  %2254 = vmatpush1.msra.mxu0 0.0
  %2255 = vmatprep.subr.mxu0 0.0
  %2256 = vmatpush1.msra.mxu0 0.0
  %2257 = vmatprep.subr.mxu0 0.0
  %2258 = vmatpush1.msra.mxu0 0.0
  %2259 = vmatprep.subr.mxu0 0.0
  %2260 = vmatpush1.msra.mxu0 0.0
  %2261 = vmatprep.subr.mxu0 0.0
  %2262 = vmatpush1.msra.mxu0 0.0
  %2263 = vmatprep.subr.mxu0 0.0
  %2264 = vmatpush1.msra.mxu0 0.0
  %2265 = vmatprep.subr.mxu0 0.0
  %2266 = vmatpush1.msra.mxu0 0.0
  %2267 = vmatprep.subr.mxu0 0.0
  %2268 = vmatpush1.msra.mxu0 0.0
  %2269 = vmatprep.subr.mxu0 0.0
  %2270 = vmatpush1.msra.mxu0 0.0
  %2271 = vmatprep.subr.mxu0 0.0
  %2272 = vmatpush1.msra.mxu0 0.0
  %2273 = vmatprep.mubr.f32.mxu0 0.0
  %v2274 = vand.u32 %v2029, 4294901760
  %v2275 = vsub.f32 %v2029, %v2274
  %2276 = vmatmul.mubr.f32.gmra.mrb[0].mxu0 %v2275
  %v2277 = vpop.f32.mrb[0].mxu0
  %v2278 = vadd.f32 %v2198, %v2277
  %v2279 = vpop.f32.mrb[0].mxu0
  %2280 = vdwg.mxu0
  %2281 = vmatprep.subr.mxu0 0.0
  %v2282 = vand.u32 %v2016, 4294901760
  %2283 = vmatpush1.msra.mxu0 %v2282
  %2284 = vmatprep.subr.mxu0 0.0
  %v2285 = vand.u32 %v2017, 4294901760
  %2286 = vmatpush1.msra.mxu0 %v2285
  %2287 = vmatprep.subr.mxu0 0.0
  %v2288 = vand.u32 %v2018, 4294901760
  %2289 = vmatpush1.msra.mxu0 %v2288
  %2290 = vmatprep.subr.mxu0 0.0
  %v2291 = vand.u32 %v2019, 4294901760
  %2292 = vmatpush1.msra.mxu0 %v2291
  %2293 = vmatprep.subr.mxu0 0.0
  %2294 = vmatpush1.msra.mxu0 0.0
  %2295 = vmatprep.subr.mxu0 0.0
  %2296 = vmatpush1.msra.mxu0 0.0
  %2297 = vmatprep.subr.mxu0 0.0
  %2298 = vmatpush1.msra.mxu0 0.0
  %2299 = vmatprep.subr.mxu0 0.0
  %2300 = vmatpush1.msra.mxu0 0.0
  %2301 = vmatprep.subr.mxu0 0.0
  %2302 = vmatpush1.msra.mxu0 0.0
  %2303 = vmatprep.subr.mxu0 0.0
  %2304 = vmatpush1.msra.mxu0 0.0
  %2305 = vmatprep.subr.mxu0 0.0
  %2306 = vmatpush1.msra.mxu0 0.0
  %2307 = vmatprep.subr.mxu0 0.0
  %2308 = vmatpush1.msra.mxu0 0.0
  %2309 = vmatprep.subr.mxu0 0.0
  %2310 = vmatpush1.msra.mxu0 0.0
  %2311 = vmatprep.subr.mxu0 0.0
  %2312 = vmatpush1.msra.mxu0 0.0
  %2313 = vmatprep.subr.mxu0 0.0
  %2314 = vmatpush1.msra.mxu0 0.0
  %2315 = vmatprep.subr.mxu0 0.0
  %2316 = vmatpush1.msra.mxu0 0.0
  %2317 = vmatprep.subr.mxu0 0.0
  %2318 = vmatpush1.msra.mxu0 0.0
  %2319 = vmatprep.subr.mxu0 0.0
  %2320 = vmatpush1.msra.mxu0 0.0
  %2321 = vmatprep.subr.mxu0 0.0
  %2322 = vmatpush1.msra.mxu0 0.0
  %2323 = vmatprep.subr.mxu0 0.0
  %2324 = vmatpush1.msra.mxu0 0.0
  %2325 = vmatprep.subr.mxu0 0.0
  %2326 = vmatpush1.msra.mxu0 0.0
  %2327 = vmatprep.subr.mxu0 0.0
  %2328 = vmatpush1.msra.mxu0 0.0
  %2329 = vmatprep.subr.mxu0 0.0
  %2330 = vmatpush1.msra.mxu0 0.0
  %2331 = vmatprep.subr.mxu0 0.0
  %2332 = vmatpush1.msra.mxu0 0.0
  %2333 = vmatprep.subr.mxu0 0.0
  %2334 = vmatpush1.msra.mxu0 0.0
  %2335 = vmatprep.subr.mxu0 0.0
  %2336 = vmatpush1.msra.mxu0 0.0
  %2337 = vmatprep.subr.mxu0 0.0
  %2338 = vmatpush1.msra.mxu0 0.0
  %2339 = vmatprep.subr.mxu0 0.0
  %2340 = vmatpush1.msra.mxu0 0.0
  %2341 = vmatprep.subr.mxu0 0.0
  %2342 = vmatpush1.msra.mxu0 0.0
  %2343 = vmatprep.subr.mxu0 0.0
  %2344 = vmatpush1.msra.mxu0 0.0
  %2345 = vmatprep.subr.mxu0 0.0
  %2346 = vmatpush1.msra.mxu0 0.0
  %2347 = vmatprep.subr.mxu0 0.0
  %2348 = vmatpush1.msra.mxu0 0.0
  %2349 = vmatprep.mubr.f32.mxu0 0.0
  %v2350 = vand.u32 %v2029, 4294901760
  %v2351 = vsub.f32 %v2029, %v2350
  %v2352 = vand.u32 %v2351, 4294901760
  %2353 = vmatmul.mubr.f32.gmra.mrb[0].mxu0 %v2352
  %v2354 = vpop.f32.mrb[0].mxu0
  %v2355 = vadd.f32 %v2278, %v2354
  %v2356 = vpop.f32.mrb[0].mxu0
  %2357 = vdwg.mxu0
  %2358 = vmatprep.subr.mxu0 0.0
  %v2359 = vand.u32 %v2016, 4294901760
  %v2360 = vsub.f32 %v2016, %v2359
  %v2361 = vand.u32 %v2360, 4294901760
  %2362 = vmatpush1.msra.mxu0 %v2361
  %2363 = vmatprep.subr.mxu0 0.0
  %v2364 = vand.u32 %v2017, 4294901760
  %v2365 = vsub.f32 %v2017, %v2364
  %v2366 = vand.u32 %v2365, 4294901760
  %2367 = vmatpush1.msra.mxu0 %v2366
  %2368 = vmatprep.subr.mxu0 0.0
  %v2369 = vand.u32 %v2018, 4294901760
  %v2370 = vsub.f32 %v2018, %v2369
  %v2371 = vand.u32 %v2370, 4294901760
  %2372 = vmatpush1.msra.mxu0 %v2371
  %2373 = vmatprep.subr.mxu0 0.0
  %v2374 = vand.u32 %v2019, 4294901760
  %v2375 = vsub.f32 %v2019, %v2374
  %v2376 = vand.u32 %v2375, 4294901760
  %2377 = vmatpush1.msra.mxu0 %v2376
  %2378 = vmatprep.subr.mxu0 0.0
  %2379 = vmatpush1.msra.mxu0 0.0
  %2380 = vmatprep.subr.mxu0 0.0
  %2381 = vmatpush1.msra.mxu0 0.0
  %2382 = vmatprep.subr.mxu0 0.0
  %2383 = vmatpush1.msra.mxu0 0.0
  %2384 = vmatprep.subr.mxu0 0.0
  %2385 = vmatpush1.msra.mxu0 0.0
  %2386 = vmatprep.subr.mxu0 0.0
  %2387 = vmatpush1.msra.mxu0 0.0
  %2388 = vmatprep.subr.mxu0 0.0
  %2389 = vmatpush1.msra.mxu0 0.0
  %2390 = vmatprep.subr.mxu0 0.0
  %2391 = vmatpush1.msra.mxu0 0.0
  %2392 = vmatprep.subr.mxu0 0.0
  %2393 = vmatpush1.msra.mxu0 0.0
  %2394 = vmatprep.subr.mxu0 0.0
  %2395 = vmatpush1.msra.mxu0 0.0
  %2396 = vmatprep.subr.mxu0 0.0
  %2397 = vmatpush1.msra.mxu0 0.0
  %2398 = vmatprep.subr.mxu0 0.0
  %2399 = vmatpush1.msra.mxu0 0.0
  %2400 = vmatprep.subr.mxu0 0.0
  %2401 = vmatpush1.msra.mxu0 0.0
  %2402 = vmatprep.subr.mxu0 0.0
  %2403 = vmatpush1.msra.mxu0 0.0
  %2404 = vmatprep.subr.mxu0 0.0
  %2405 = vmatpush1.msra.mxu0 0.0
  %2406 = vmatprep.subr.mxu0 0.0
  %2407 = vmatpush1.msra.mxu0 0.0
  %2408 = vmatprep.subr.mxu0 0.0
  %2409 = vmatpush1.msra.mxu0 0.0
  %2410 = vmatprep.subr.mxu0 0.0
  %2411 = vmatpush1.msra.mxu0 0.0
  %2412 = vmatprep.subr.mxu0 0.0
  %2413 = vmatpush1.msra.mxu0 0.0
  %2414 = vmatprep.subr.mxu0 0.0
  %2415 = vmatpush1.msra.mxu0 0.0
  %2416 = vmatprep.subr.mxu0 0.0
  %2417 = vmatpush1.msra.mxu0 0.0
  %2418 = vmatprep.subr.mxu0 0.0
  %2419 = vmatpush1.msra.mxu0 0.0
  %2420 = vmatprep.subr.mxu0 0.0
  %2421 = vmatpush1.msra.mxu0 0.0
  %2422 = vmatprep.subr.mxu0 0.0
  %2423 = vmatpush1.msra.mxu0 0.0
  %2424 = vmatprep.subr.mxu0 0.0
  %2425 = vmatpush1.msra.mxu0 0.0
  %2426 = vmatprep.subr.mxu0 0.0
  %2427 = vmatpush1.msra.mxu0 0.0
  %2428 = vmatprep.subr.mxu0 0.0
  %2429 = vmatpush1.msra.mxu0 0.0
  %2430 = vmatprep.subr.mxu0 0.0
  %2431 = vmatpush1.msra.mxu0 0.0
  %2432 = vmatprep.subr.mxu0 0.0
  %2433 = vmatpush1.msra.mxu0 0.0
  %2434 = vmatprep.mubr.f32.mxu0 0.0
  %v2435 = vand.u32 %v2029, 4294901760
  %2436 = vmatmul.mubr.f32.gmra.mrb[0].mxu0 %v2435
  %v2437 = vpop.f32.mrb[0].mxu0
  %v2438 = vadd.f32 %v2355, %v2437
  %v2439 = vpop.f32.mrb[0].mxu0
  %2440 = vdwg.mxu0
  %2441 = vmatprep.subr.mxu0 0.0
  %v2442 = vand.u32 %v2016, 4294901760
  %2443 = vmatpush1.msra.mxu0 %v2442
  %2444 = vmatprep.subr.mxu0 0.0
  %v2445 = vand.u32 %v2017, 4294901760
  %2446 = vmatpush1.msra.mxu0 %v2445
  %2447 = vmatprep.subr.mxu0 0.0
  %v2448 = vand.u32 %v2018, 4294901760
  %2449 = vmatpush1.msra.mxu0 %v2448
  %2450 = vmatprep.subr.mxu0 0.0
  %v2451 = vand.u32 %v2019, 4294901760
  %2452 = vmatpush1.msra.mxu0 %v2451
  %2453 = vmatprep.subr.mxu0 0.0
  %2454 = vmatpush1.msra.mxu0 0.0
  %2455 = vmatprep.subr.mxu0 0.0
  %2456 = vmatpush1.msra.mxu0 0.0
  %2457 = vmatprep.subr.mxu0 0.0
  %2458 = vmatpush1.msra.mxu0 0.0
  %2459 = vmatprep.subr.mxu0 0.0
  %2460 = vmatpush1.msra.mxu0 0.0
  %2461 = vmatprep.subr.mxu0 0.0
  %2462 = vmatpush1.msra.mxu0 0.0
  %2463 = vmatprep.subr.mxu0 0.0
  %2464 = vmatpush1.msra.mxu0 0.0
  %2465 = vmatprep.subr.mxu0 0.0
  %2466 = vmatpush1.msra.mxu0 0.0
  %2467 = vmatprep.subr.mxu0 0.0
  %2468 = vmatpush1.msra.mxu0 0.0
  %2469 = vmatprep.subr.mxu0 0.0
  %2470 = vmatpush1.msra.mxu0 0.0
  %2471 = vmatprep.subr.mxu0 0.0
  %2472 = vmatpush1.msra.mxu0 0.0
  %2473 = vmatprep.subr.mxu0 0.0
  %2474 = vmatpush1.msra.mxu0 0.0
  %2475 = vmatprep.subr.mxu0 0.0
  %2476 = vmatpush1.msra.mxu0 0.0
  %2477 = vmatprep.subr.mxu0 0.0
  %2478 = vmatpush1.msra.mxu0 0.0
  %2479 = vmatprep.subr.mxu0 0.0
  %2480 = vmatpush1.msra.mxu0 0.0
  %2481 = vmatprep.subr.mxu0 0.0
  %2482 = vmatpush1.msra.mxu0 0.0
  %2483 = vmatprep.subr.mxu0 0.0
  %2484 = vmatpush1.msra.mxu0 0.0
  %2485 = vmatprep.subr.mxu0 0.0
  %2486 = vmatpush1.msra.mxu0 0.0
  %2487 = vmatprep.subr.mxu0 0.0
  %2488 = vmatpush1.msra.mxu0 0.0
  %2489 = vmatprep.subr.mxu0 0.0
  %2490 = vmatpush1.msra.mxu0 0.0
  %2491 = vmatprep.subr.mxu0 0.0
  %2492 = vmatpush1.msra.mxu0 0.0
  %2493 = vmatprep.subr.mxu0 0.0
  %2494 = vmatpush1.msra.mxu0 0.0
  %2495 = vmatprep.subr.mxu0 0.0
  %2496 = vmatpush1.msra.mxu0 0.0
  %2497 = vmatprep.subr.mxu0 0.0
  %2498 = vmatpush1.msra.mxu0 0.0
  %2499 = vmatprep.subr.mxu0 0.0
  %2500 = vmatpush1.msra.mxu0 0.0
  %2501 = vmatprep.subr.mxu0 0.0
  %2502 = vmatpush1.msra.mxu0 0.0
  %2503 = vmatprep.subr.mxu0 0.0
  %2504 = vmatpush1.msra.mxu0 0.0
  %2505 = vmatprep.subr.mxu0 0.0
  %2506 = vmatpush1.msra.mxu0 0.0
  %2507 = vmatprep.subr.mxu0 0.0
  %2508 = vmatpush1.msra.mxu0 0.0
  %2509 = vmatprep.mubr.f32.mxu0 0.0
  %v2510 = vand.u32 %v2029, 4294901760
  %2511 = vmatmul.mubr.f32.gmra.mrb[0].mxu0 %v2510
  %v2512 = vpop.f32.mrb[0].mxu0
  %v2513 = vadd.f32 %v2438, %v2512
  %v2514 = vpop.f32.mrb[0].mxu0
  %2515 = vdwg.mxu0
  %vm2516 = vcmask 23552
  %2517 = vst.msk [vmem:[%s12] sm:$0xff] %vm2516, %v2513
  // Predicated region
  $region50: #{dnn_model_forward.1} parent=0 // pred_check
    _
  $region51: #{dnn_model_forward.1} parent=0 // pred_check_branch
    %2519 = sbr.rel (0) target = $region53
  $region52: #{dnn_model_forward.1} parent=0 // pred_region
    _
  $region53: #{dnn_model_forward.1} parent=0 // pred_fallthru
    _
  // Predicated region
  $region54: #{dnn_model_forward.1} parent=0 // pred_check
    _
  $region55: #{dnn_model_forward.1} parent=0 // pred_check_branch
    %2521 = sbr.rel (0) target = $region57
  $region56: #{dnn_model_forward.1} parent=0 // pred_region
    _
  $region57: #{dnn_model_forward.1} parent=0 // pred_fallthru
    _

</llo_original>
